<compile_context>
chip_gen: v5e
topology: v5e:2x2
jax: 0.10.0
libtpu: 0.0.40
codegen_flags: <defaults>
</compile_context>

<pallas_src>
import functools

import jax
import jax.numpy as jnp
from jax.experimental import pallas as pl
from jax.experimental.pallas import tpu as pltpu


# ----------------------------------------------------------------------------
# Fused Refine kernel: one grid step == Bt batch elements, everything in VMEM
# ----------------------------------------------------------------------------
def _refine_kernel(f_ref, pm_ref, w_ref, b_ref, ry_ref, rxc_ref, o_ref, xpad,
                   *, H, Bt, compute_dtype):
    # f_ref   : (Bt, H, W*C)     lane-packed skip feature (Cin zero-padded to C)
    # pm_ref  : (Bt, h, w*C)     lane-packed coarse map (h = H/s, w = W/s)
    # w_ref   : (5, 3*W*C, W*C)  banded conv weights, dy taps folded into K
    # b_ref   : (5, 1, W*C)      lane-packed biases (FS1, FS2, FS3, MM1, MM2)
    # ry_ref  : (H, h)           row-interp matrix (align_corners=True)
    # rxc_ref : (w*C, W*C)       column-interp matrix, channel-blocked
    # o_ref   : (Bt, H, W*C)     lane-packed output
    # xpad    : (Bt*(H+2), W*C)  f32 scratch: one vertically padded slot/image
    HP = H + 2
    Mv = Bt * HP - 2                  # matmul M; rows at image seams are junk
    lanes = xpad.shape[-1]

    # Zero only the halo rows (2 per image).  Interior rows are fully
    # overwritten before every conv; halo rows are never written elsewhere.
    zrow = jnp.zeros((1, lanes), xpad.dtype)
    for i in range(Bt):
        xpad[pl.ds(i * HP, 1), :] = zrow
        xpad[pl.ds(i * HP + H + 1, 1), :] = zrow

    def conv(idx):
        # lhs row m = [xpad[m] | xpad[m+1] | xpad[m+2]]: the three dy taps are
        # one K = 3*lanes contraction; the dx taps and the horizontal zero
        # padding live in the band structure of w_ref[idx].
        lhs = jnp.concatenate([xpad[pl.ds(dy, Mv), :] for dy in range(3)],
                              axis=1).astype(compute_dtype)
        acc = jnp.dot(lhs, w_ref[idx], preferred_element_type=jnp.float32)
        return acc + b_ref[idx]                       # (Mv, lanes) f32

    def stash(y):
        # Write the valid rows of y into the interior of each image slot,
        # fusing the input ReLU of the next conv (exact, since relu(0) == 0).
        for i in range(Bt):
            xpad[pl.ds(i * HP + 1, H), :] = jnp.maximum(
                y[i * HP:i * HP + H], 0.0).astype(xpad.dtype)

    # s = convFS1(f)
    for i in range(Bt):
        xpad[pl.ds(i * HP + 1, H), :] = f_ref[i].astype(xpad.dtype)
    s = conv(0)

    # s = s + convFS3(relu(convFS2(relu(s))))
    stash(s)
    sr = conv(1)
    stash(sr)
    s = s + conv(2)

    # m = s + bilinear_upsample(pm)   (separable -> two small f32 matmuls)
    m_list = []
    for i in range(Bt):
        up = jnp.dot(ry_ref[...], pm_ref[i], preferred_element_type=jnp.float32)
        up = jnp.dot(up, rxc_ref[...], preferred_element_type=jnp.float32)
        m_i = s[i * HP:i * HP + H] + up
        m_list.append(m_i)
        xpad[pl.ds(i * HP + 1, H), :] = jnp.maximum(m_i, 0.0).astype(xpad.dtype)

    # m = m + convMM2(relu(convMM1(relu(m))))
    mr = conv(3)
    stash(mr)
    mr = conv(4)
    for i in range(Bt):
        o_ref[i] = (m_list[i] + mr[i * HP:i * HP + H]).astype(o_ref.dtype)


# ----------------------------------------------------------------------------
# Trace-time weight / interpolation-matrix construction (plain JAX, tiny)
# ----------------------------------------------------------------------------
def _banded_weights(w, W, dtype):
    """w: (3, 3, Cin, Cout) -> (3*W*Cin, W*Cout).

    For each dy tap, band_dy[xin*Cin+ci, xout*Cout+co] = w[dy, xin-xout+1, ci, co]
    when |xin - xout| <= 1, else 0 (band edges implement horizontal zero pad).
    The three dy bands are concatenated along K so one matmul of a
    [row | row+1 | row+2] operand performs the whole 3x3 stencil.
    """
    bands = []
    for dy in range(3):
        m = None
        for dx in range(3):
            shift = jnp.eye(W, k=1 - dx, dtype=jnp.float32)  # xin == xout+dx-1
            term = jnp.kron(shift, w[dy, dx].astype(jnp.float32))
            m = term if m is None else m + term
        bands.append(m)
    return jnp.concatenate(bands, axis=0).astype(dtype)


def _interp_matrix(n_in, n_out, dtype=jnp.float32):
    """(n_out, n_in) matrix R with out = R @ in matching
    F.interpolate(mode='bilinear', align_corners=True) along one axis."""
    if n_out == 1 or n_in == 1:
        src = jnp.zeros((n_out,), jnp.float32)
    else:
        src = jnp.arange(n_out, dtype=jnp.float32) * (n_in - 1) / (n_out - 1)
    i0 = jnp.clip(jnp.floor(src).astype(jnp.int32), 0, n_in - 1)
    i1 = jnp.minimum(i0 + 1, n_in - 1)
    t = src - i0.astype(jnp.float32)
    eye = jnp.eye(n_in, dtype=jnp.float32)
    return ((1.0 - t)[:, None] * eye[i0] + t[:, None] * eye[i1]).astype(dtype)


def _pick_batch_tile(B):
    """Fold the whole batch into one grid step on single-TC chips (v5e/v6e);
    keep >= 2 parallel grid steps on dual-TC v7x so both cores are used."""
    try:
        kind = jax.devices()[0].device_kind.lower()
    except Exception:
        kind = ""
    if "v7" in kind and B >= 2:
        return 1
    return B


# ----------------------------------------------------------------------------
# Fused forward wrapper
# ----------------------------------------------------------------------------
def refine_fused(f, pm, params, scale_factor=2, *, compute_dtype=jnp.float32,
                 batch_tile=None):
    """f: (B, H, W, inplanes), pm: (B, H/s, W/s, planes) -> (B, H, W, planes)."""
    B, H, W, Cin = f.shape
    C = params["FS1_w"].shape[-1]
    _, hh, ww, Cpm = pm.shape
    assert Cpm == C and hh * scale_factor == H and ww * scale_factor == W

    Bt = _pick_batch_tile(B) if batch_tile is None else batch_tile
    if B % Bt:
        Bt = 1
    lanes = W * C

    # Lane-pack: channels ride with W on the lane axis (W*C = 128 here).
    # Zero-pad Cin up to C so FS1 shares the full-lane padded scratch.
    f_packed = jnp.pad(f, ((0, 0), (0, 0), (0, 0), (0, C - Cin))
                       ).reshape(B, H, lanes)
    pm_packed = pm.reshape(B, hh, ww * C)

    w_fs1 = jnp.pad(params["FS1_w"], ((0, 0), (0, 0), (0, C - Cin), (0, 0)))
    w_all = jnp.stack([_banded_weights(w, W, compute_dtype)
                       for w in (w_fs1, params["FS2_w"], params["FS3_w"],
                                 params["MM1_w"], params["MM2_w"])])
    biases = jnp.stack([jnp.tile(params[f"{n}_b"], W)[None, :]
                        for n in ("FS1", "FS2", "FS3", "MM1", "MM2")])  # f32
    ry = _interp_matrix(hh, H)                                       # (H, hh)
    rxc = jnp.kron(_interp_matrix(ww, W).T,
                   jnp.eye(C, dtype=jnp.float32))                    # (ww*C, lanes)

    kernel = functools.partial(_refine_kernel, H=H, Bt=Bt,
                               compute_dtype=compute_dtype)

    out = pl.pallas_call(
        kernel,
        out_shape=jax.ShapeDtypeStruct((B, H, lanes), jnp.float32),
        grid=(B // Bt,),
        in_specs=[
            pl.BlockSpec((Bt, H, lanes), lambda b: (b, 0, 0)),
            pl.BlockSpec((Bt, hh, ww * C), lambda b: (b, 0, 0)),
            # Constant index_maps -> weights/bias/interp stay resident in VMEM.
            pl.BlockSpec((5, 3 * lanes, lanes), lambda b: (0, 0, 0)),
            pl.BlockSpec((5, 1, lanes), lambda b: (0, 0, 0)),
            pl.BlockSpec((H, hh), lambda b: (0, 0)),
            pl.BlockSpec((ww * C, lanes), lambda b: (0, 0)),
        ],
        out_specs=pl.BlockSpec((Bt, H, lanes), lambda b: (b, 0, 0)),
        scratch_shapes=[pltpu.VMEM((Bt * (H + 2), lanes), jnp.float32)],
        compiler_params=pltpu.CompilerParams(dimension_semantics=("parallel",)),
    )(f_packed, pm_packed, w_all, biases, ry, rxc)
    return out.reshape(B, H, W, C)


# ----------------------------------------------------------------------------
# Pure-JAX reference (independent path: XLA conv + gather-based upsample).
# compute_dtype != f32 mirrors the kernel's operand rounding (bf16 operands,
# f32 accumulation) so the self-test stays tight.
# ----------------------------------------------------------------------------
def _ref_conv(x, w, b, compute_dtype):
    if jnp.dtype(compute_dtype) != jnp.dtype(jnp.float32):
        x = x.astype(compute_dtype).astype(jnp.float32)
        w = w.astype(compute_dtype).astype(jnp.float32)
    y = jax.lax.conv_general_dilated(
        x, w, window_strides=(1, 1), padding=((1, 1), (1, 1)),
        dimension_numbers=("NHWC", "HWIO", "NHWC"),
        precision=jax.lax.Precision.HIGHEST)
    return y + b


def _ref_upsample(x, scale):
    B, h, w, C = x.shape
    H, W = h * scale, w * scale

    def src(n_in, n_out):
        if n_out == 1 or n_in == 1:
            return jnp.zeros((n_out,), jnp.float32)
        return jnp.arange(n_out, dtype=jnp.float32) * (n_in - 1) / (n_out - 1)

    ys, xs = src(h, H), src(w, W)
    y0 = jnp.floor(ys).astype(jnp.int32); y1 = jnp.minimum(y0 + 1, h - 1)
    x0 = jnp.floor(xs).astype(jnp.int32); x1 = jnp.minimum(x0 + 1, w - 1)
    wy = (ys - y0.astype(jnp.float32))[None, :, None, None]
    wx = (xs - x0.astype(jnp.float32))[None, None, :, None]
    v = jnp.take(x, y0, axis=1) * (1.0 - wy) + jnp.take(x, y1, axis=1) * wy
    return jnp.take(v, x0, axis=2) * (1.0 - wx) + jnp.take(v, x1, axis=2) * wx


def refine_reference(f, pm, params, scale_factor=2, compute_dtype=jnp.float32):
    s = _ref_conv(f, params["FS1_w"], params["FS1_b"], compute_dtype)
    sr = _ref_conv(jax.nn.relu(s), params["FS2_w"], params["FS2_b"], compute_dtype)
    sr = _ref_conv(jax.nn.relu(sr), params["FS3_w"], params["FS3_b"], compute_dtype)
    s = s + sr
    m = s + _ref_upsample(pm, scale_factor)
    mr = _ref_conv(jax.nn.relu(m), params["MM1_w"], params["MM1_b"], compute_dtype)
    mr = _ref_conv(jax.nn.relu(mr), params["MM2_w"], params["MM2_b"], compute_dtype)
    return m + mr


# ----------------------------------------------------------------------------
# Deterministic synthetic weights (Conv weights stored as (3, 3, Cin, Cout))
# ----------------------------------------------------------------------------
def init_params(key, inplanes, planes):
    names_cin = [("FS1", inplanes), ("FS2", planes), ("FS3", planes),
                 ("MM1", planes), ("MM2", planes)]
    params = {}
    for i, (name, cin) in enumerate(names_cin):
        kw, kb = jax.random.split(jax.random.fold_in(key, i))
        fan_in = cin * 9
        params[f"{name}_w"] = (
            jax.random.normal(kw, (3, 3, cin, planes), jnp.float32)
            * (2.0 / fan_in) ** 0.5)
        params[f"{name}_b"] = jax.random.normal(kb, (planes,), jnp.float32) * 0.01
    return params


if __name__ == "__main__":
    inplanes, planes, scale = 4, 8, 2
    B, H, W = 2, 16, 16            # W * planes == 128 -> fully lane-dense

    key = jax.random.PRNGKey(0)
    kf, kp, kw = jax.random.split(key, 3)
    f = jax.random.normal(kf, (B, H, W, inplanes), jnp.float32)
    pm = jax.random.normal(kp, (B, H // scale, W // scale, planes), jnp.float32)
    params = init_params(kw, inplanes, planes)

    # --- f32 operands (default path), tight cross-check ---------------------
    run_f32 = jax.jit(functools.partial(refine_fused, scale_factor=scale,
                                        compute_dtype=jnp.float32))
    out = jax.block_until_ready(run_f32(f, pm, params))
    assert out.shape == (B, H, W, planes), out.shape
    assert bool(jnp.all(jnp.isfinite(out)))
    ref = refine_reference(f, pm, params, scale_factor=scale)
    err = float(jnp.max(jnp.abs(out - ref)))
    assert err < 2e-3, f"f32 max |err| = {err}"

    # --- bf16 operands (native MXU path on v6e/v7x), f32 accumulation -------
    run_bf16 = jax.jit(functools.partial(refine_fused, scale_factor=scale,
                                         compute_dtype=jnp.bfloat16))
    out_bf = jax.block_until_ready(run_bf16(f, pm, params))
    assert bool(jnp.all(jnp.isfinite(out_bf)))
    ref_bf = refine_reference(f, pm, params, scale_factor=scale,
                              compute_dtype=jnp.bfloat16)
    err_bf = float(jnp.max(jnp.abs(out_bf - ref_bf)))
    assert err_bf < 2e-2, f"bf16 max |err| = {err_bf}"

    print("KERNEL_OK")
</pallas_src>

<mosaic_0001>
module attributes {stable_mosaic.version = 11 : i64} {
  func.func @_refine_kernel(%arg0: i32, %arg1: memref<2x16x128xf32, #tpu.memory_space<vmem>>, %arg2: memref<2x8x64xf32, #tpu.memory_space<vmem>>, %arg3: memref<5x384x128xf32, #tpu.memory_space<vmem>>, %arg4: memref<5x1x128xf32, #tpu.memory_space<vmem>>, %arg5: memref<16x8xf32, #tpu.memory_space<vmem>>, %arg6: memref<64x128xf32, #tpu.memory_space<vmem>>, %arg7: memref<2x16x128xf32, #tpu.memory_space<vmem>>, %arg8: memref<36x128xf32, #tpu.memory_space<vmem>>) attributes {dimension_semantics = [#tpu.dimension_semantics<parallel>], iteration_bounds = array<i64: 1>, scalar_prefetch = 0 : i64, scratch_operands = 1 : i64, tpu.core_type = #tpu.core_type<tc>, window_params = [{transform_indices = @transform_0, window_bounds = array<i64: 2, 16, 128>}, {transform_indices = @transform_1, window_bounds = array<i64: 2, 8, 64>}, {pipeline_mode = #tpu.pipeline_mode<synchronous>, transform_indices = @transform_2, window_bounds = array<i64: 5, 384, 128>}, {pipeline_mode = #tpu.pipeline_mode<synchronous>, transform_indices = @transform_3, window_bounds = array<i64: 5, 1, 128>}, {pipeline_mode = #tpu.pipeline_mode<synchronous>, transform_indices = @transform_4, window_bounds = array<i64: 16, 8>}, {pipeline_mode = #tpu.pipeline_mode<synchronous>, transform_indices = @transform_5, window_bounds = array<i64: 64, 128>}, {transform_indices = @transform_6, window_bounds = array<i64: 2, 16, 128>}]} {
    %cst = arith.constant 0.000000e+00 : f32
    %0 = vector.broadcast %cst : f32 to vector<1x128xf32>
    %c0 = arith.constant 0 : index
    %c0_0 = arith.constant 0 : index
    %1 = vector.load %arg8[%c0, %c0_0] : memref<36x128xf32, #tpu.memory_space<vmem>>, vector<1x128xf32>
    tpu.vector_store %arg8[%c0, %c0_0], %0 {strides = array<i32>} : memref<36x128xf32, #tpu.memory_space<vmem>>, vector<1x128xf32>,
    %c17 = arith.constant 17 : index
    %c0_1 = arith.constant 0 : index
    %2 = vector.load %arg8[%c17, %c0_1] : memref<36x128xf32, #tpu.memory_space<vmem>>, vector<1x128xf32>
    tpu.vector_store %arg8[%c17, %c0_1], %0 {strides = array<i32>} : memref<36x128xf32, #tpu.memory_space<vmem>>, vector<1x128xf32>,
    %c18 = arith.constant 18 : index
    %c0_2 = arith.constant 0 : index
    %3 = vector.load %arg8[%c18, %c0_2] : memref<36x128xf32, #tpu.memory_space<vmem>>, vector<1x128xf32>
    tpu.vector_store %arg8[%c18, %c0_2], %0 {strides = array<i32>} : memref<36x128xf32, #tpu.memory_space<vmem>>, vector<1x128xf32>,
    %c35 = arith.constant 35 : index
    %c0_3 = arith.constant 0 : index
    %4 = vector.load %arg8[%c35, %c0_3] : memref<36x128xf32, #tpu.memory_space<vmem>>, vector<1x128xf32>
    tpu.vector_store %arg8[%c35, %c0_3], %0 {strides = array<i32>} : memref<36x128xf32, #tpu.memory_space<vmem>>, vector<1x128xf32>,
    %c0_4 = arith.constant 0 : index
    %c0_5 = arith.constant 0 : index
    %c0_6 = arith.constant 0 : index
    %5 = vector.load %arg1[%c0_4, %c0_5, %c0_6] : memref<2x16x128xf32, #tpu.memory_space<vmem>>, vector<1x16x128xf32>
    %6 = vector.shape_cast %5 : vector<1x16x128xf32> to vector<16x128xf32>
    %c1 = arith.constant 1 : index
    %c0_7 = arith.constant 0 : index
    %7 = vector.load %arg8[%c1, %c0_7] : memref<36x128xf32, #tpu.memory_space<vmem>>, vector<16x128xf32>
    tpu.vector_store %arg8[%c1, %c0_7], %6 {strides = array<i32>} : memref<36x128xf32, #tpu.memory_space<vmem>>, vector<16x128xf32>,
    %c1_8 = arith.constant 1 : index
    %c0_9 = arith.constant 0 : index
    %c0_10 = arith.constant 0 : index
    %8 = vector.load %arg1[%c1_8, %c0_9, %c0_10] : memref<2x16x128xf32, #tpu.memory_space<vmem>>, vector<1x16x128xf32>
    %9 = vector.shape_cast %8 : vector<1x16x128xf32> to vector<16x128xf32>
    %c19 = arith.constant 19 : index
    %c0_11 = arith.constant 0 : index
    %10 = vector.load %arg8[%c19, %c0_11] : memref<36x128xf32, #tpu.memory_space<vmem>>, vector<16x128xf32>
    tpu.vector_store %arg8[%c19, %c0_11], %9 {strides = array<i32>} : memref<36x128xf32, #tpu.memory_space<vmem>>, vector<16x128xf32>,
    %c0_12 = arith.constant 0 : index
    %c0_13 = arith.constant 0 : index
    %11 = vector.load %arg8[%c0_12, %c0_13] : memref<36x128xf32, #tpu.memory_space<vmem>>, vector<34x128xf32>
    %c1_14 = arith.constant 1 : index
    %c0_15 = arith.constant 0 : index
    %12 = vector.load %arg8[%c1_14, %c0_15] : memref<36x128xf32, #tpu.memory_space<vmem>>, vector<34x128xf32>
    %c2 = arith.constant 2 : index
    %c0_16 = arith.constant 0 : index
    %13 = vector.load %arg8[%c2, %c0_16] : memref<36x128xf32, #tpu.memory_space<vmem>>, vector<34x128xf32>
    %14 = tpu.concatenate %11, %12, %13 in 1 : vector<34x128xf32>, vector<34x128xf32>, vector<34x128xf32> -> vector<34x384xf32>
    %c0_17 = arith.constant 0 : index
    %c0_18 = arith.constant 0 : index
    %c0_19 = arith.constant 0 : index
    %15 = vector.load %arg3[%c0_17, %c0_18, %c0_19] : memref<5x384x128xf32, #tpu.memory_space<vmem>>, vector<1x384x128xf32>
    %16 = vector.shape_cast %15 : vector<1x384x128xf32> to vector<384x128xf32>
    %cst_20 = arith.constant dense<0.000000e+00> : vector<34x128xf32>
    %17 = tpu.matmul %14, %16, %cst_20 {dimension_numbers = #tpu.dot_dimension_numbers<[1], [0], [0], [1], [0, 0, 1, 1], [], []>} : vector<34x384xf32>, vector<384x128xf32>, vector<34x128xf32> -> vector<34x128xf32>
    %c0_21 = arith.constant 0 : index
    %c0_22 = arith.constant 0 : index
    %c0_23 = arith.constant 0 : index
    %18 = vector.load %arg4[%c0_21, %c0_22, %c0_23] : memref<5x1x128xf32, #tpu.memory_space<vmem>>, vector<1x1x128xf32>
    %19 = vector.shape_cast %18 : vector<1x1x128xf32> to vector<1x128xf32>
    %20 = vector.broadcast %19 : vector<1x128xf32> to vector<34x128xf32>
    %21 = arith.addf %17, %20 : vector<34x128xf32>
    %22 = vector.extract_strided_slice %21 {offsets = [0, 0], sizes = [16, 128], strides = [1, 1]} : vector<34x128xf32> to vector<16x128xf32>
    %cst_24 = arith.constant 0.000000e+00 : f32
    %23 = vector.broadcast %cst_24 : f32 to vector<16x128xf32>
    %24 = arith.maximumf %22, %23 : vector<16x128xf32>
    %c1_25 = arith.constant 1 : index
    %c0_26 = arith.constant 0 : index
    %25 = vector.load %arg8[%c1_25, %c0_26] : memref<36x128xf32, #tpu.memory_space<vmem>>, vector<16x128xf32>
    tpu.vector_store %arg8[%c1_25, %c0_26], %24 {strides = array<i32>} : memref<36x128xf32, #tpu.memory_space<vmem>>, vector<16x128xf32>,
    %26 = vector.extract_strided_slice %21 {offsets = [18, 0], sizes = [16, 128], strides = [1, 1]} : vector<34x128xf32> to vector<16x128xf32>
    %cst_27 = arith.constant 0.000000e+00 : f32
    %27 = vector.broadcast %cst_27 : f32 to vector<16x128xf32>
    %28 = arith.maximumf %26, %27 : vector<16x128xf32>
    %c19_28 = arith.constant 19 : index
    %c0_29 = arith.constant 0 : index
    %29 = vector.load %arg8[%c19_28, %c0_29] : memref<36x128xf32, #tpu.memory_space<vmem>>, vector<16x128xf32>
    tpu.vector_store %arg8[%c19_28, %c0_29], %28 {strides = array<i32>} : memref<36x128xf32, #tpu.memory_space<vmem>>, vector<16x128xf32>,
    %c0_30 = arith.constant 0 : index
    %c0_31 = arith.constant 0 : index
    %30 = vector.load %arg8[%c0_30, %c0_31] : memref<36x128xf32, #tpu.memory_space<vmem>>, vector<34x128xf32>
    %c1_32 = arith.constant 1 : index
    %c0_33 = arith.constant 0 : index
    %31 = vector.load %arg8[%c1_32, %c0_33] : memref<36x128xf32, #tpu.memory_space<vmem>>, vector<34x128xf32>
    %c2_34 = arith.constant 2 : index
    %c0_35 = arith.constant 0 : index
    %32 = vector.load %arg8[%c2_34, %c0_35] : memref<36x128xf32, #tpu.memory_space<vmem>>, vector<34x128xf32>
    %33 = tpu.concatenate %30, %31, %32 in 1 : vector<34x128xf32>, vector<34x128xf32>, vector<34x128xf32> -> vector<34x384xf32>
    %c1_36 = arith.constant 1 : index
    %c0_37 = arith.constant 0 : index
    %c0_38 = arith.constant 0 : index
    %34 = vector.load %arg3[%c1_36, %c0_37, %c0_38] : memref<5x384x128xf32, #tpu.memory_space<vmem>>, vector<1x384x128xf32>
    %35 = vector.shape_cast %34 : vector<1x384x128xf32> to vector<384x128xf32>
    %cst_39 = arith.constant dense<0.000000e+00> : vector<34x128xf32>
    %36 = tpu.matmul %33, %35, %cst_39 {dimension_numbers = #tpu.dot_dimension_numbers<[1], [0], [0], [1], [0, 0, 1, 1], [], []>} : vector<34x384xf32>, vector<384x128xf32>, vector<34x128xf32> -> vector<34x128xf32>
    %c1_40 = arith.constant 1 : index
    %c0_41 = arith.constant 0 : index
    %c0_42 = arith.constant 0 : index
    %37 = vector.load %arg4[%c1_40, %c0_41, %c0_42] : memref<5x1x128xf32, #tpu.memory_space<vmem>>, vector<1x1x128xf32>
    %38 = vector.shape_cast %37 : vector<1x1x128xf32> to vector<1x128xf32>
    %39 = vector.broadcast %38 : vector<1x128xf32> to vector<34x128xf32>
    %40 = arith.addf %36, %39 : vector<34x128xf32>
    %41 = vector.extract_strided_slice %40 {offsets = [0, 0], sizes = [16, 128], strides = [1, 1]} : vector<34x128xf32> to vector<16x128xf32>
    %cst_43 = arith.constant 0.000000e+00 : f32
    %42 = vector.broadcast %cst_43 : f32 to vector<16x128xf32>
    %43 = arith.maximumf %41, %42 : vector<16x128xf32>
    %c1_44 = arith.constant 1 : index
    %c0_45 = arith.constant 0 : index
    %44 = vector.load %arg8[%c1_44, %c0_45] : memref<36x128xf32, #tpu.memory_space<vmem>>, vector<16x128xf32>
    tpu.vector_store %arg8[%c1_44, %c0_45], %43 {strides = array<i32>} : memref<36x128xf32, #tpu.memory_space<vmem>>, vector<16x128xf32>,
    %45 = vector.extract_strided_slice %40 {offsets = [18, 0], sizes = [16, 128], strides = [1, 1]} : vector<34x128xf32> to vector<16x128xf32>
    %cst_46 = arith.constant 0.000000e+00 : f32
    %46 = vector.broadcast %cst_46 : f32 to vector<16x128xf32>
    %47 = arith.maximumf %45, %46 : vector<16x128xf32>
    %c19_47 = arith.constant 19 : index
    %c0_48 = arith.constant 0 : index
    %48 = vector.load %arg8[%c19_47, %c0_48] : memref<36x128xf32, #tpu.memory_space<vmem>>, vector<16x128xf32>
    tpu.vector_store %arg8[%c19_47, %c0_48], %47 {strides = array<i32>} : memref<36x128xf32, #tpu.memory_space<vmem>>, vector<16x128xf32>,
    %c0_49 = arith.constant 0 : index
    %c0_50 = arith.constant 0 : index
    %49 = vector.load %arg8[%c0_49, %c0_50] : memref<36x128xf32, #tpu.memory_space<vmem>>, vector<34x128xf32>
    %c1_51 = arith.constant 1 : index
    %c0_52 = arith.constant 0 : index
    %50 = vector.load %arg8[%c1_51, %c0_52] : memref<36x128xf32, #tpu.memory_space<vmem>>, vector<34x128xf32>
    %c2_53 = arith.constant 2 : index
    %c0_54 = arith.constant 0 : index
    %51 = vector.load %arg8[%c2_53, %c0_54] : memref<36x128xf32, #tpu.memory_space<vmem>>, vector<34x128xf32>
    %52 = tpu.concatenate %49, %50, %51 in 1 : vector<34x128xf32>, vector<34x128xf32>, vector<34x128xf32> -> vector<34x384xf32>
    %c2_55 = arith.constant 2 : index
    %c0_56 = arith.constant 0 : index
    %c0_57 = arith.constant 0 : index
    %53 = vector.load %arg3[%c2_55, %c0_56, %c0_57] : memref<5x384x128xf32, #tpu.memory_space<vmem>>, vector<1x384x128xf32>
    %54 = vector.shape_cast %53 : vector<1x384x128xf32> to vector<384x128xf32>
    %cst_58 = arith.constant dense<0.000000e+00> : vector<34x128xf32>
    %55 = tpu.matmul %52, %54, %cst_58 {dimension_numbers = #tpu.dot_dimension_numbers<[1], [0], [0], [1], [0, 0, 1, 1], [], []>} : vector<34x384xf32>, vector<384x128xf32>, vector<34x128xf32> -> vector<34x128xf32>
    %c2_59 = arith.constant 2 : index
    %c0_60 = arith.constant 0 : index
    %c0_61 = arith.constant 0 : index
    %56 = vector.load %arg4[%c2_59, %c0_60, %c0_61] : memref<5x1x128xf32, #tpu.memory_space<vmem>>, vector<1x1x128xf32>
    %57 = vector.shape_cast %56 : vector<1x1x128xf32> to vector<1x128xf32>
    %58 = vector.broadcast %57 : vector<1x128xf32> to vector<34x128xf32>
    %59 = arith.addf %55, %58 : vector<34x128xf32>
    %60 = arith.addf %21, %59 : vector<34x128xf32>
    %c0_62 = arith.constant 0 : index
    %c0_63 = arith.constant 0 : index
    %61 = vector.load %arg5[%c0_62, %c0_63] : memref<16x8xf32, #tpu.memory_space<vmem>>, vector<16x8xf32>
    %c0_64 = arith.constant 0 : index
    %c0_65 = arith.constant 0 : index
    %c0_66 = arith.constant 0 : index
    %62 = vector.load %arg2[%c0_64, %c0_65, %c0_66] : memref<2x8x64xf32, #tpu.memory_space<vmem>>, vector<1x8x64xf32>
    %63 = vector.shape_cast %62 : vector<1x8x64xf32> to vector<8x64xf32>
    %cst_67 = arith.constant dense<0.000000e+00> : vector<16x64xf32>
    %64 = tpu.matmul %61, %63, %cst_67 {dimension_numbers = #tpu.dot_dimension_numbers<[1], [0], [0], [1], [0, 0, 1, 1], [], []>} : vector<16x8xf32>, vector<8x64xf32>, vector<16x64xf32> -> vector<16x64xf32>
    %c0_68 = arith.constant 0 : index
    %c0_69 = arith.constant 0 : index
    %65 = vector.load %arg6[%c0_68, %c0_69] : memref<64x128xf32, #tpu.memory_space<vmem>>, vector<64x128xf32>
    %cst_70 = arith.constant dense<0.000000e+00> : vector<16x128xf32>
    %66 = tpu.matmul %64, %65, %cst_70 {dimension_numbers = #tpu.dot_dimension_numbers<[1], [0], [0], [1], [0, 0, 1, 1], [], []>} : vector<16x64xf32>, vector<64x128xf32>, vector<16x128xf32> -> vector<16x128xf32>
    %67 = vector.extract_strided_slice %60 {offsets = [0, 0], sizes = [16, 128], strides = [1, 1]} : vector<34x128xf32> to vector<16x128xf32>
    %68 = arith.addf %67, %66 : vector<16x128xf32>
    %cst_71 = arith.constant 0.000000e+00 : f32
    %69 = vector.broadcast %cst_71 : f32 to vector<16x128xf32>
    %70 = arith.maximumf %68, %69 : vector<16x128xf32>
    %c1_72 = arith.constant 1 : index
    %c0_73 = arith.constant 0 : index
    %71 = vector.load %arg8[%c1_72, %c0_73] : memref<36x128xf32, #tpu.memory_space<vmem>>, vector<16x128xf32>
    tpu.vector_store %arg8[%c1_72, %c0_73], %70 {strides = array<i32>} : memref<36x128xf32, #tpu.memory_space<vmem>>, vector<16x128xf32>,
    %c0_74 = arith.constant 0 : index
    %c0_75 = arith.constant 0 : index
    %72 = vector.load %arg5[%c0_74, %c0_75] : memref<16x8xf32, #tpu.memory_space<vmem>>, vector<16x8xf32>
    %c1_76 = arith.constant 1 : index
    %c0_77 = arith.constant 0 : index
    %c0_78 = arith.constant 0 : index
    %73 = vector.load %arg2[%c1_76, %c0_77, %c0_78] : memref<2x8x64xf32, #tpu.memory_space<vmem>>, vector<1x8x64xf32>
    %74 = vector.shape_cast %73 : vector<1x8x64xf32> to vector<8x64xf32>
    %cst_79 = arith.constant dense<0.000000e+00> : vector<16x64xf32>
    %75 = tpu.matmul %72, %74, %cst_79 {dimension_numbers = #tpu.dot_dimension_numbers<[1], [0], [0], [1], [0, 0, 1, 1], [], []>} : vector<16x8xf32>, vector<8x64xf32>, vector<16x64xf32> -> vector<16x64xf32>
    %c0_80 = arith.constant 0 : index
    %c0_81 = arith.constant 0 : index
    %76 = vector.load %arg6[%c0_80, %c0_81] : memref<64x128xf32, #tpu.memory_space<vmem>>, vector<64x128xf32>
    %cst_82 = arith.constant dense<0.000000e+00> : vector<16x128xf32>
    %77 = tpu.matmul %75, %76, %cst_82 {dimension_numbers = #tpu.dot_dimension_numbers<[1], [0], [0], [1], [0, 0, 1, 1], [], []>} : vector<16x64xf32>, vector<64x128xf32>, vector<16x128xf32> -> vector<16x128xf32>
    %78 = vector.extract_strided_slice %60 {offsets = [18, 0], sizes = [16, 128], strides = [1, 1]} : vector<34x128xf32> to vector<16x128xf32>
    %79 = arith.addf %78, %77 : vector<16x128xf32>
    %cst_83 = arith.constant 0.000000e+00 : f32
    %80 = vector.broadcast %cst_83 : f32 to vector<16x128xf32>
    %81 = arith.maximumf %79, %80 : vector<16x128xf32>
    %c19_84 = arith.constant 19 : index
    %c0_85 = arith.constant 0 : index
    %82 = vector.load %arg8[%c19_84, %c0_85] : memref<36x128xf32, #tpu.memory_space<vmem>>, vector<16x128xf32>
    tpu.vector_store %arg8[%c19_84, %c0_85], %81 {strides = array<i32>} : memref<36x128xf32, #tpu.memory_space<vmem>>, vector<16x128xf32>,
    %c0_86 = arith.constant 0 : index
    %c0_87 = arith.constant 0 : index
    %83 = vector.load %arg8[%c0_86, %c0_87] : memref<36x128xf32, #tpu.memory_space<vmem>>, vector<34x128xf32>
    %c1_88 = arith.constant 1 : index
    %c0_89 = arith.constant 0 : index
    %84 = vector.load %arg8[%c1_88, %c0_89] : memref<36x128xf32, #tpu.memory_space<vmem>>, vector<34x128xf32>
    %c2_90 = arith.constant 2 : index
    %c0_91 = arith.constant 0 : index
    %85 = vector.load %arg8[%c2_90, %c0_91] : memref<36x128xf32, #tpu.memory_space<vmem>>, vector<34x128xf32>
    %86 = tpu.concatenate %83, %84, %85 in 1 : vector<34x128xf32>, vector<34x128xf32>, vector<34x128xf32> -> vector<34x384xf32>
    %c3 = arith.constant 3 : index
    %c0_92 = arith.constant 0 : index
    %c0_93 = arith.constant 0 : index
    %87 = vector.load %arg3[%c3, %c0_92, %c0_93] : memref<5x384x128xf32, #tpu.memory_space<vmem>>, vector<1x384x128xf32>
    %88 = vector.shape_cast %87 : vector<1x384x128xf32> to vector<384x128xf32>
    %cst_94 = arith.constant dense<0.000000e+00> : vector<34x128xf32>
    %89 = tpu.matmul %86, %88, %cst_94 {dimension_numbers = #tpu.dot_dimension_numbers<[1], [0], [0], [1], [0, 0, 1, 1], [], []>} : vector<34x384xf32>, vector<384x128xf32>, vector<34x128xf32> -> vector<34x128xf32>
    %c3_95 = arith.constant 3 : index
    %c0_96 = arith.constant 0 : index
    %c0_97 = arith.constant 0 : index
    %90 = vector.load %arg4[%c3_95, %c0_96, %c0_97] : memref<5x1x128xf32, #tpu.memory_space<vmem>>, vector<1x1x128xf32>
    %91 = vector.shape_cast %90 : vector<1x1x128xf32> to vector<1x128xf32>
    %92 = vector.broadcast %91 : vector<1x128xf32> to vector<34x128xf32>
    %93 = arith.addf %89, %92 : vector<34x128xf32>
    %94 = vector.extract_strided_slice %93 {offsets = [0, 0], sizes = [16, 128], strides = [1, 1]} : vector<34x128xf32> to vector<16x128xf32>
    %cst_98 = arith.constant 0.000000e+00 : f32
    %95 = vector.broadcast %cst_98 : f32 to vector<16x128xf32>
    %96 = arith.maximumf %94, %95 : vector<16x128xf32>
    %c1_99 = arith.constant 1 : index
    %c0_100 = arith.constant 0 : index
    %97 = vector.load %arg8[%c1_99, %c0_100] : memref<36x128xf32, #tpu.memory_space<vmem>>, vector<16x128xf32>
    tpu.vector_store %arg8[%c1_99, %c0_100], %96 {strides = array<i32>} : memref<36x128xf32, #tpu.memory_space<vmem>>, vector<16x128xf32>,
    %98 = vector.extract_strided_slice %93 {offsets = [18, 0], sizes = [16, 128], strides = [1, 1]} : vector<34x128xf32> to vector<16x128xf32>
    %cst_101 = arith.constant 0.000000e+00 : f32
    %99 = vector.broadcast %cst_101 : f32 to vector<16x128xf32>
    %100 = arith.maximumf %98, %99 : vector<16x128xf32>
    %c19_102 = arith.constant 19 : index
    %c0_103 = arith.constant 0 : index
    %101 = vector.load %arg8[%c19_102, %c0_103] : memref<36x128xf32, #tpu.memory_space<vmem>>, vector<16x128xf32>
    tpu.vector_store %arg8[%c19_102, %c0_103], %100 {strides = array<i32>} : memref<36x128xf32, #tpu.memory_space<vmem>>, vector<16x128xf32>,
    %c0_104 = arith.constant 0 : index
    %c0_105 = arith.constant 0 : index
    %102 = vector.load %arg8[%c0_104, %c0_105] : memref<36x128xf32, #tpu.memory_space<vmem>>, vector<34x128xf32>
    %c1_106 = arith.constant 1 : index
    %c0_107 = arith.constant 0 : index
    %103 = vector.load %arg8[%c1_106, %c0_107] : memref<36x128xf32, #tpu.memory_space<vmem>>, vector<34x128xf32>
    %c2_108 = arith.constant 2 : index
    %c0_109 = arith.constant 0 : index
    %104 = vector.load %arg8[%c2_108, %c0_109] : memref<36x128xf32, #tpu.memory_space<vmem>>, vector<34x128xf32>
    %105 = tpu.concatenate %102, %103, %104 in 1 : vector<34x128xf32>, vector<34x128xf32>, vector<34x128xf32> -> vector<34x384xf32>
    %c4 = arith.constant 4 : index
    %c0_110 = arith.constant 0 : index
    %c0_111 = arith.constant 0 : index
    %106 = vector.load %arg3[%c4, %c0_110, %c0_111] : memref<5x384x128xf32, #tpu.memory_space<vmem>>, vector<1x384x128xf32>
    %107 = vector.shape_cast %106 : vector<1x384x128xf32> to vector<384x128xf32>
    %cst_112 = arith.constant dense<0.000000e+00> : vector<34x128xf32>
    %108 = tpu.matmul %105, %107, %cst_112 {dimension_numbers = #tpu.dot_dimension_numbers<[1], [0], [0], [1], [0, 0, 1, 1], [], []>} : vector<34x384xf32>, vector<384x128xf32>, vector<34x128xf32> -> vector<34x128xf32>
    %c4_113 = arith.constant 4 : index
    %c0_114 = arith.constant 0 : index
    %c0_115 = arith.constant 0 : index
    %109 = vector.load %arg4[%c4_113, %c0_114, %c0_115] : memref<5x1x128xf32, #tpu.memory_space<vmem>>, vector<1x1x128xf32>
    %110 = vector.shape_cast %109 : vector<1x1x128xf32> to vector<1x128xf32>
    %111 = vector.broadcast %110 : vector<1x128xf32> to vector<34x128xf32>
    %112 = arith.addf %108, %111 : vector<34x128xf32>
    %113 = vector.extract_strided_slice %112 {offsets = [0, 0], sizes = [16, 128], strides = [1, 1]} : vector<34x128xf32> to vector<16x128xf32>
    %114 = arith.addf %68, %113 : vector<16x128xf32>
    %c0_116 = arith.constant 0 : index
    %c0_117 = arith.constant 0 : index
    %c0_118 = arith.constant 0 : index
    %115 = vector.load %arg7[%c0_116, %c0_117, %c0_118] : memref<2x16x128xf32, #tpu.memory_space<vmem>>, vector<1x16x128xf32>
    %116 = vector.shape_cast %115 : vector<1x16x128xf32> to vector<16x128xf32>
    %117 = vector.shape_cast %114 : vector<16x128xf32> to vector<1x16x128xf32>
    tpu.vector_store %arg7[%c0_116, %c0_117, %c0_118], %117 {strides = array<i32>} : memref<2x16x128xf32, #tpu.memory_space<vmem>>, vector<1x16x128xf32>,
    %118 = vector.extract_strided_slice %112 {offsets = [18, 0], sizes = [16, 128], strides = [1, 1]} : vector<34x128xf32> to vector<16x128xf32>
    %119 = arith.addf %79, %118 : vector<16x128xf32>
    %c1_119 = arith.constant 1 : index
    %c0_120 = arith.constant 0 : index
    %c0_121 = arith.constant 0 : index
    %120 = vector.load %arg7[%c1_119, %c0_120, %c0_121] : memref<2x16x128xf32, #tpu.memory_space<vmem>>, vector<1x16x128xf32>
    %121 = vector.shape_cast %120 : vector<1x16x128xf32> to vector<16x128xf32>
    %122 = vector.shape_cast %119 : vector<16x128xf32> to vector<1x16x128xf32>
    tpu.vector_store %arg7[%c1_119, %c0_120, %c0_121], %122 {strides = array<i32>} : memref<2x16x128xf32, #tpu.memory_space<vmem>>, vector<1x16x128xf32>,
    return
  }
  func.func @transform_0(%arg0: i32) -> (i32, i32, i32) {
    %c0_i32 = arith.constant 0 : i32
    %c0_i32_0 = arith.constant 0 : i32
    %c0_i32_1 = arith.constant 0 : i32
    return %arg0, %c0_i32, %c0_i32_0 : i32, i32, i32
  }
  func.func @transform_1(%arg0: i32) -> (i32, i32, i32) {
    %c0_i32 = arith.constant 0 : i32
    %c0_i32_0 = arith.constant 0 : i32
    %c0_i32_1 = arith.constant 0 : i32
    return %arg0, %c0_i32, %c0_i32_0 : i32, i32, i32
  }
  func.func @transform_2(%arg0: i32) -> (i32, i32, i32) {
    %c0_i32 = arith.constant 0 : i32
    %c0_i32_0 = arith.constant 0 : i32
    %c0_i32_1 = arith.constant 0 : i32
    %c0_i32_2 = arith.constant 0 : i32
    return %c0_i32, %c0_i32_0, %c0_i32_1 : i32, i32, i32
  }
  func.func @transform_3(%arg0: i32) -> (i32, i32, i32) {
    %c0_i32 = arith.constant 0 : i32
    %c0_i32_0 = arith.constant 0 : i32
    %c0_i32_1 = arith.constant 0 : i32
    %c0_i32_2 = arith.constant 0 : i32
    return %c0_i32, %c0_i32_0, %c0_i32_1 : i32, i32, i32
  }
  func.func @transform_4(%arg0: i32) -> (i32, i32) {
    %c0_i32 = arith.constant 0 : i32
    %c0_i32_0 = arith.constant 0 : i32
    %c0_i32_1 = arith.constant 0 : i32
    return %c0_i32, %c0_i32_0 : i32, i32
  }
  func.func @transform_5(%arg0: i32) -> (i32, i32) {
    %c0_i32 = arith.constant 0 : i32
    %c0_i32_0 = arith.constant 0 : i32
    %c0_i32_1 = arith.constant 0 : i32
    return %c0_i32, %c0_i32_0 : i32, i32
  }
  func.func @transform_6(%arg0: i32) -> (i32, i32, i32) {
    %c0_i32 = arith.constant 0 : i32
    %c0_i32_0 = arith.constant 0 : i32
    %c0_i32_1 = arith.constant 0 : i32
    return %arg0, %c0_i32, %c0_i32_0 : i32, i32, i32
  }
}

</mosaic_0001>

<llo_original>
// kernel: tile.28
$region0: #{tile.28}
  #allocation0 [shape = 's32[1]{0}', space=sflag, size = 0x4, scoped, tag = 'scoped memory for tile.28']
  %s0 = inlined_call_operand.vmem [shape: f32[8], index: 0, kind: input, shape index: {}]
  %s1 = inlined_call_operand.vmem [shape: f32[16,8], index: 1, kind: output, shape index: {}]
  // Predicated region
  $region2: #{tile.28} parent=0 // pred_check
    _
  $region3: #{tile.28} parent=0 // pred_check_branch
    %3 = sbr.rel (0) target = $region5
  $region4: #{tile.28} parent=0 // pred_region
    _
  $region5: #{tile.28} parent=0 // pred_fallthru
    _
  %v4 = vld [vmem:[%s0] ss:$0 sm:$0xff]
  %5 = vst [vmem:[%s1] sm:$0xff] %v4
  %s6 = scalar_lea.vmem %s1, 8
  %7 = vst [vmem:[%s6] sm:$0xff] %v4

// kernel: tile.45
$region0: #{tile.45}
  %s0 = inlined_call_operand.vmem [shape: f32[16,8], index: 0, kind: input, shape index: {}]
  %s1 = inlined_call_operand.vmem [shape: f32[1,1,128], index: 1, kind: output, shape index: {}]
  $region1: #{tile.45} parent=0
    #allocation0 [shape = 'u8[4096]{0}', space=vmem, size = 0x1000, scoped, tag = 'scoped mem for output reshape']
    %v2 = vld [vmem:[%s0] sm:$0x1]
    %vm3 = vcmask 64512
    %4 = vst.msk [vmem:[#allocation0] sm:$0x1] %vm3, %v2
    %s5 = scalar_lea.vmem %s0, 15
    %v6 = vld [vmem:[%s5] sm:$0x1]
    %7 = vrot.lane.b32.xlu0 %v6, 120
    %v8 = vpop.permute.xlu0 %7
    %vm9 = vcmask 1048512
    %10 = vst.msk [vmem:[#allocation0] sm:$0x1] %vm9, %v8
    %s11 = scalar_lea.vmem %s0, 14
    %v12 = vld [vmem:[%s11] sm:$0x1]
    %13 = vrot.lane.b32.xlu0 %v12, 112
    %v14 = vpop.permute.xlu0 %13
    %vm15 = vcmask 982912
    %16 = vst.msk [vmem:[#allocation0] sm:$0x1] %vm15, %v14
    %s17 = scalar_lea.vmem %s0, 13
    %v18 = vld [vmem:[%s17] sm:$0x1]
    %19 = vrot.lane.b32.xlu0 %v18, 104
    %v20 = vpop.permute.xlu0 %19
    %vm21 = vcmask 917312
    %22 = vst.msk [vmem:[#allocation0] sm:$0x1] %vm21, %v20
    %s23 = scalar_lea.vmem %s0, 12
    %v24 = vld [vmem:[%s23] sm:$0x1]
    %25 = vrot.lane.b32.xlu0 %v24, 96
    %v26 = vpop.permute.xlu0 %25
    %vm27 = vcmask 851712
    %28 = vst.msk [vmem:[#allocation0] sm:$0x1] %vm27, %v26
    %s29 = scalar_lea.vmem %s0, 11
    %v30 = vld [vmem:[%s29] sm:$0x1]
    %31 = vrot.lane.b32.xlu0 %v30, 88
    %v32 = vpop.permute.xlu0 %31
    %vm33 = vcmask 786112
    %34 = vst.msk [vmem:[#allocation0] sm:$0x1] %vm33, %v32
    %s35 = scalar_lea.vmem %s0, 10
    %v36 = vld [vmem:[%s35] sm:$0x1]
    %37 = vrot.lane.b32.xlu0 %v36, 80
    %v38 = vpop.permute.xlu0 %37
    %vm39 = vcmask 720512
    %40 = vst.msk [vmem:[#allocation0] sm:$0x1] %vm39, %v38
    %s41 = scalar_lea.vmem %s0, 9
    %v42 = vld [vmem:[%s41] sm:$0x1]
    %43 = vrot.lane.b32.xlu0 %v42, 72
    %v44 = vpop.permute.xlu0 %43
    %vm45 = vcmask 654912
    %46 = vst.msk [vmem:[#allocation0] sm:$0x1] %vm45, %v44
    %s47 = scalar_lea.vmem %s0, 8
    %v48 = vld [vmem:[%s47] sm:$0x1]
    %49 = vrot.lane.b32.xlu0 %v48, 64
    %v50 = vpop.permute.xlu0 %49
    %vm51 = vcmask 589312
    %52 = vst.msk [vmem:[#allocation0] sm:$0x1] %vm51, %v50
    %s53 = scalar_lea.vmem %s0, 7
    %v54 = vld [vmem:[%s53] sm:$0x1]
    %55 = vrot.lane.b32.xlu0 %v54, 56
    %v56 = vpop.permute.xlu0 %55
    %vm57 = vcmask 523712
    %58 = vst.msk [vmem:[#allocation0] sm:$0x1] %vm57, %v56
    %s59 = scalar_lea.vmem %s0, 6
    %v60 = vld [vmem:[%s59] sm:$0x1]
    %61 = vrot.lane.b32.xlu0 %v60, 48
    %v62 = vpop.permute.xlu0 %61
    %vm63 = vcmask 458112
    %64 = vst.msk [vmem:[#allocation0] sm:$0x1] %vm63, %v62
    %s65 = scalar_lea.vmem %s0, 5
    %v66 = vld [vmem:[%s65] sm:$0x1]
    %67 = vrot.lane.b32.xlu0 %v66, 40
    %v68 = vpop.permute.xlu0 %67
    %vm69 = vcmask 392512
    %70 = vst.msk [vmem:[#allocation0] sm:$0x1] %vm69, %v68
    %s71 = scalar_lea.vmem %s0, 4
    %v72 = vld [vmem:[%s71] sm:$0x1]
    %73 = vrot.lane.b32.xlu0 %v72, 32
    %v74 = vpop.permute.xlu0 %73
    %vm75 = vcmask 326912
    %76 = vst.msk [vmem:[#allocation0] sm:$0x1] %vm75, %v74
    %s77 = scalar_lea.vmem %s0, 3
    %v78 = vld [vmem:[%s77] sm:$0x1]
    %79 = vrot.lane.b32.xlu0 %v78, 24
    %v80 = vpop.permute.xlu0 %79
    %vm81 = vcmask 261312
    %82 = vst.msk [vmem:[#allocation0] sm:$0x1] %vm81, %v80
    %s83 = scalar_lea.vmem %s0, 2
    %v84 = vld [vmem:[%s83] sm:$0x1]
    %85 = vrot.lane.b32.xlu0 %v84, 16
    %v86 = vpop.permute.xlu0 %85
    %vm87 = vcmask 195712
    %88 = vst.msk [vmem:[#allocation0] sm:$0x1] %vm87, %v86
    %s89 = scalar_lea.vmem %s0, 1
    %v90 = vld [vmem:[%s89] sm:$0x1]
    %91 = vrot.lane.b32.xlu0 %v90, 8
    %v92 = vpop.permute.xlu0 %91
    %vm93 = vcmask 130112
    %94 = vst.msk [vmem:[#allocation0] sm:$0x1] %vm93, %v92
    %s96 = ssub.s32 2, 1
    %v97 = vld [vmem:[#allocation0] sm:%s96]
    %s99 = ssub.s32 2, 1
    %100 = vst [vmem:[%s1] sm:%s99] %v97

// kernel: refine_fused.1
$region0: #{refine_fused.1}
  #allocation0 [shape = 'u32[]', space=smem, size = 0x4, offset = 0x4, fixed_abs, tag = 'smem constant byte address 0x4 - core index']
  #allocation1 [shape = 'u32[72,128]{1,0:T(1,128)}', space=vmem, size = 0x9000, scoped, tag = 'internal scratch']
  #allocation2 [shape = 'f32[36,128]{1,0:T(8,128)}', space=vmem, size = 0x5000, scoped, tag = 'scratch operand']
  %s0 = inlined_call_operand.vmem [shape: f32[2,16,128], index: 0, kind: input, shape index: {}]
  %s1 = inlined_call_operand.vmem [shape: f32[2,8,64], index: 1, kind: input, shape index: {}]
  %s2 = inlined_call_operand.vmem [shape: f32[5,384,128], index: 2, kind: input, shape index: {}]
  %s3 = inlined_call_operand.vmem [shape: f32[5,1,128], index: 3, kind: input, shape index: {}]
  %s4 = inlined_call_operand.vmem [shape: f32[16,8], index: 4, kind: input, shape index: {}]
  %s5 = inlined_call_operand.vmem [shape: f32[64,128], index: 5, kind: input, shape index: {}]
  %s6 = inlined_call_operand.vmem [shape: f32[2,16,128], index: 6, kind: output, shape index: {}]
  %s7 = sld [smem:[#allocation0]]
  $region34: #{refine_fused.1} parent=0
    _
  %s9 = ssub.s32 1, %s7
  %s10 = scalar_select 0, %s9, %s7
  // Predicated region
  $region2: #{refine_fused.1} parent=0 // pred_check
    _
  $region3: #{refine_fused.1} parent=0 // pred_check_branch
    %12 = sbr.rel (0) target = $region5
  $region4: #{refine_fused.1} parent=0 // pred_region
    _
  $region5: #{refine_fused.1} parent=0 // pred_fallthru
    _
  // Predicated region
  $region6: #{refine_fused.1} parent=0 // pred_check
    _
  $region7: #{refine_fused.1} parent=0 // pred_check_branch
    %14 = sbr.rel (0) target = $region9
  $region8: #{refine_fused.1} parent=0 // pred_region
    _
  $region9: #{refine_fused.1} parent=0 // pred_fallthru
    _
  // Predicated region
  $region10: #{refine_fused.1} parent=0 // pred_check
    _
  $region11: #{refine_fused.1} parent=0 // pred_check_branch
    %16 = sbr.rel (0) target = $region13
  $region12: #{refine_fused.1} parent=0 // pred_region
    _
  $region13: #{refine_fused.1} parent=0 // pred_fallthru
    _
  // Predicated region
  $region14: #{refine_fused.1} parent=0 // pred_check
    _
  $region15: #{refine_fused.1} parent=0 // pred_check_branch
    %18 = sbr.rel (0) target = $region17
  $region16: #{refine_fused.1} parent=0 // pred_region
    _
  $region17: #{refine_fused.1} parent=0 // pred_fallthru
    _
  // Predicated region
  $region18: #{refine_fused.1} parent=0 // pred_check
    _
  $region19: #{refine_fused.1} parent=0 // pred_check_branch
    %20 = sbr.rel (0) target = $region21
  $region20: #{refine_fused.1} parent=0 // pred_region
    _
  $region21: #{refine_fused.1} parent=0 // pred_fallthru
    _
  // Predicated region
  $region22: #{refine_fused.1} parent=0 // pred_check
    _
  $region23: #{refine_fused.1} parent=0 // pred_check_branch
    %22 = sbr.rel (0) target = $region25
  $region24: #{refine_fused.1} parent=0 // pred_region
    _
  $region25: #{refine_fused.1} parent=0 // pred_fallthru
    _
  %23 = vst [vmem:[#allocation2] sm:$0x1] 0.0
  %24 = vst [vmem:[#allocation2 + $0x11] sm:$0x1] 0.0
  %25 = vst [vmem:[#allocation2 + $0x12] sm:$0x1] 0.0
  %26 = vst [vmem:[#allocation2 + $0x23] sm:$0x1] 0.0
  %v27 = vld [vmem:[%s0] sm:$0xff]
  %v28 = vld [vmem:[%s0 + $0x8] sm:$0xff]
  %29 = vst [vmem:[#allocation2 + $0x1] sm:$0xff] %v27
  %30 = vst [vmem:[#allocation2 + $0x9] sm:$0xff] %v28
  %s31 = scalar_lea.vmem %s0, 16
  %v32 = vld [vmem:[%s31] sm:$0xff]
  %v33 = vld [vmem:[%s31 + $0x8] sm:$0xff]
  %34 = vst [vmem:[#allocation2 + $0x13] sm:$0xff] %v32
  %35 = vst [vmem:[#allocation2 + $0x1b] sm:$0xff] %v33
  %v36 = vld [vmem:[#allocation2] sm:$0xff]
  %v37 = vld [vmem:[#allocation2 + $0x8] sm:$0xff]
  %v38 = vld [vmem:[#allocation2 + $0x10] sm:$0xff]
  %v39 = vld [vmem:[#allocation2 + $0x18] sm:$0xff]
  %v40 = vld [vmem:[#allocation2 + $0x20] sm:$0x3]
  %v41 = vld [vmem:[#allocation2 + $0x1] sm:$0xff]
  %v42 = vld [vmem:[#allocation2 + $0x9] sm:$0xff]
  %v43 = vld [vmem:[#allocation2 + $0x11] sm:$0xff]
  %v44 = vld [vmem:[#allocation2 + $0x19] sm:$0xff]
  %v45 = vld [vmem:[#allocation2 + $0x21] sm:$0x3]
  %v46 = vld [vmem:[#allocation2 + $0x2] sm:$0xff]
  %v47 = vld [vmem:[#allocation2 + $0xa] sm:$0xff]
  %v48 = vld [vmem:[#allocation2 + $0x12] sm:$0xff]
  %v49 = vld [vmem:[#allocation2 + $0x1a] sm:$0xff]
  %v50 = vld [vmem:[#allocation2 + $0x22] sm:$0x3]
  %v51 = vld [vmem:[%s2] sm:$0xff]
  %v52 = vld [vmem:[%s2 + $0x8] sm:$0xff]
  %v53 = vld [vmem:[%s2 + $0x10] sm:$0xff]
  %v54 = vld [vmem:[%s2 + $0x18] sm:$0xff]
  %v55 = vld [vmem:[%s2 + $0x20] sm:$0xff]
  %v56 = vld [vmem:[%s2 + $0x28] sm:$0xff]
  %v57 = vld [vmem:[%s2 + $0x30] sm:$0xff]
  %v58 = vld [vmem:[%s2 + $0x38] sm:$0xff]
  %v59 = vld [vmem:[%s2 + $0x40] sm:$0xff]
  %v60 = vld [vmem:[%s2 + $0x48] sm:$0xff]
  %v61 = vld [vmem:[%s2 + $0x50] sm:$0xff]
  %v62 = vld [vmem:[%s2 + $0x58] sm:$0xff]
  %v63 = vld [vmem:[%s2 + $0x60] sm:$0xff]
  %v64 = vld [vmem:[%s2 + $0x68] sm:$0xff]
  %v65 = vld [vmem:[%s2 + $0x70] sm:$0xff]
  %v66 = vld [vmem:[%s2 + $0x78] sm:$0xff]
  %v67 = vld [vmem:[%s2 + $0x80] sm:$0xff]
  %v68 = vld [vmem:[%s2 + $0x88] sm:$0xff]
  %v69 = vld [vmem:[%s2 + $0x90] sm:$0xff]
  %v70 = vld [vmem:[%s2 + $0x98] sm:$0xff]
  %v71 = vld [vmem:[%s2 + $0xa0] sm:$0xff]
  %v72 = vld [vmem:[%s2 + $0xa8] sm:$0xff]
  %v73 = vld [vmem:[%s2 + $0xb0] sm:$0xff]
  %v74 = vld [vmem:[%s2 + $0xb8] sm:$0xff]
  %v75 = vld [vmem:[%s2 + $0xc0] sm:$0xff]
  %v76 = vld [vmem:[%s2 + $0xc8] sm:$0xff]
  %v77 = vld [vmem:[%s2 + $0xd0] sm:$0xff]
  %v78 = vld [vmem:[%s2 + $0xd8] sm:$0xff]
  %v79 = vld [vmem:[%s2 + $0xe0] sm:$0xff]
  %v80 = vld [vmem:[%s2 + $0xe8] sm:$0xff]
  %v81 = vld [vmem:[%s2 + $0xf0] sm:$0xff]
  %v82 = vld [vmem:[%s2 + $0xf8] sm:$0xff]
  %v83 = vld [vmem:[%s2 + $0x100] sm:$0xff]
  %v84 = vld [vmem:[%s2 + $0x108] sm:$0xff]
  %v85 = vld [vmem:[%s2 + $0x110] sm:$0xff]
  %v86 = vld [vmem:[%s2 + $0x118] sm:$0xff]
  %v87 = vld [vmem:[%s2 + $0x120] sm:$0xff]
  %v88 = vld [vmem:[%s2 + $0x128] sm:$0xff]
  %v89 = vld [vmem:[%s2 + $0x130] sm:$0xff]
  %v90 = vld [vmem:[%s2 + $0x138] sm:$0xff]
  %v91 = vld [vmem:[%s2 + $0x140] sm:$0xff]
  %v92 = vld [vmem:[%s2 + $0x148] sm:$0xff]
  %v93 = vld [vmem:[%s2 + $0x150] sm:$0xff]
  %v94 = vld [vmem:[%s2 + $0x158] sm:$0xff]
  %v95 = vld [vmem:[%s2 + $0x160] sm:$0xff]
  %v96 = vld [vmem:[%s2 + $0x168] sm:$0xff]
  %v97 = vld [vmem:[%s2 + $0x170] sm:$0xff]
  %v98 = vld [vmem:[%s2 + $0x178] sm:$0xff]
  %v99 = vld [vmem:[%s3] sm:$0x1]
  %v101 = vperm.slane %v99, 0
  %103 = vmatpush.msra.mxu0 %v66
  %104 = vmatpush.msra.mxu0 %v65
  %105 = vmatpush.msra.mxu0 %v64
  %106 = vmatpush.msra.mxu0 %v63
  %107 = vmatpush.msra.mxu0 %v62
  %108 = vmatpush.msra.mxu0 %v61
  %109 = vmatpush.msra.mxu0 %v60
  %110 = vmatpush.msra.mxu0 %v59
  %111 = vmatpush.msra.mxu0 %v58
  %112 = vmatpush.msra.mxu0 %v57
  %113 = vmatpush.msra.mxu0 %v56
  %114 = vmatpush.msra.mxu0 %v55
  %115 = vmatpush.msra.mxu0 %v54
  %116 = vmatpush.msra.mxu0 %v53
  %117 = vmatpush.msra.mxu0 %v52
  %118 = vmatpush.msra.mxu0 %v51
  %119 = vmatmul.f32.gmra.mxu0 %v36
  %v120 = vpop.f32.mrf.mxu0
  %v121 = vadd.f32 %v101, %v120
  %122 = vmatmul.f32.gmra.mxu0 %v37
  %v123 = vpop.f32.mrf.mxu0
  %v124 = vadd.f32 %v101, %v123
  %125 = vmatmul.f32.gmra.mxu0 %v38
  %v126 = vpop.f32.mrf.mxu0
  %v127 = vadd.f32 %v101, %v126
  %128 = vmatmul.f32.gmra.mxu0 %v39
  %v129 = vpop.f32.mrf.mxu0
  %v130 = vadd.f32 %v101, %v129
  %131 = vmatmul.f32.gmra.mxu0 %v40
  %v132 = vpop.f32.mrf.mxu0
  %v133 = vadd.f32 %v101, %v132
  %134 = vdwg.mxu0
  %135 = vmatpush.msra.mxu0 %v82
  %136 = vmatpush.msra.mxu0 %v81
  %137 = vmatpush.msra.mxu0 %v80
  %138 = vmatpush.msra.mxu0 %v79
  %139 = vmatpush.msra.mxu0 %v78
  %140 = vmatpush.msra.mxu0 %v77
  %141 = vmatpush.msra.mxu0 %v76
  %142 = vmatpush.msra.mxu0 %v75
  %143 = vmatpush.msra.mxu0 %v74
  %144 = vmatpush.msra.mxu0 %v73
  %145 = vmatpush.msra.mxu0 %v72
  %146 = vmatpush.msra.mxu0 %v71
  %147 = vmatpush.msra.mxu0 %v70
  %148 = vmatpush.msra.mxu0 %v69
  %149 = vmatpush.msra.mxu0 %v68
  %150 = vmatpush.msra.mxu0 %v67
  %151 = vmatmul.f32.gmra.mxu0 %v41
  %v152 = vpop.f32.mrf.mxu0
  %v153 = vadd.f32 %v121, %v152
  %154 = vmatmul.f32.gmra.mxu0 %v42
  %v155 = vpop.f32.mrf.mxu0
  %v156 = vadd.f32 %v124, %v155
  %157 = vmatmul.f32.gmra.mxu0 %v43
  %v158 = vpop.f32.mrf.mxu0
  %v159 = vadd.f32 %v127, %v158
  %160 = vmatmul.f32.gmra.mxu0 %v44
  %v161 = vpop.f32.mrf.mxu0
  %v162 = vadd.f32 %v130, %v161
  %163 = vmatmul.f32.gmra.mxu0 %v45
  %v164 = vpop.f32.mrf.mxu0
  %v165 = vadd.f32 %v133, %v164
  %166 = vdwg.mxu0
  %167 = vmatpush.msra.mxu0 %v98
  %168 = vmatpush.msra.mxu0 %v97
  %169 = vmatpush.msra.mxu0 %v96
  %170 = vmatpush.msra.mxu0 %v95
  %171 = vmatpush.msra.mxu0 %v94
  %172 = vmatpush.msra.mxu0 %v93
  %173 = vmatpush.msra.mxu0 %v92
  %174 = vmatpush.msra.mxu0 %v91
  %175 = vmatpush.msra.mxu0 %v90
  %176 = vmatpush.msra.mxu0 %v89
  %177 = vmatpush.msra.mxu0 %v88
  %178 = vmatpush.msra.mxu0 %v87
  %179 = vmatpush.msra.mxu0 %v86
  %180 = vmatpush.msra.mxu0 %v85
  %181 = vmatpush.msra.mxu0 %v84
  %182 = vmatpush.msra.mxu0 %v83
  %183 = vmatmul.f32.gmra.mxu0 %v46
  %v184 = vpop.f32.mrf.mxu0
  %v185 = vadd.f32 %v153, %v184
  %186 = vmatmul.f32.gmra.mxu0 %v47
  %v187 = vpop.f32.mrf.mxu0
  %v188 = vadd.f32 %v156, %v187
  %189 = vmatmul.f32.gmra.mxu0 %v48
  %v190 = vpop.f32.mrf.mxu0
  %v191 = vadd.f32 %v159, %v190
  %192 = vmatmul.f32.gmra.mxu0 %v49
  %v193 = vpop.f32.mrf.mxu0
  %v194 = vadd.f32 %v162, %v193
  %195 = vmatmul.f32.gmra.mxu0 %v50
  %v196 = vpop.f32.mrf.mxu0
  %v197 = vadd.f32 %v165, %v196
  %198 = vdwg.mxu0
  %v199 = vmax.f32 %v185, 0.0
  %v200 = vmax.f32 %v188, 0.0
  %201 = vst [vmem:[#allocation2 + $0x1] sm:$0xff] %v199
  %202 = vst [vmem:[#allocation2 + $0x9] sm:$0xff] %v200
  %v203 = vmax.f32 %v191, 0.0
  %v204 = vmax.f32 %v194, 0.0
  %v205 = vmax.f32 %v197, 0.0
  %206 = vst [vmem:[#allocation2 + $0x11] sm:$0xfc] %v203
  %207 = vst [vmem:[#allocation2 + $0x19] sm:$0xff] %v204
  %208 = vst [vmem:[#allocation2 + $0x21] sm:$0x3] %v205
  %v209 = vld [vmem:[#allocation2] sm:$0xff]
  %v210 = vld [vmem:[#allocation2 + $0x8] sm:$0xff]
  %v211 = vld [vmem:[#allocation2 + $0x10] sm:$0xff]
  %v212 = vld [vmem:[#allocation2 + $0x18] sm:$0xff]
  %v213 = vld [vmem:[#allocation2 + $0x20] sm:$0x3]
  %v214 = vld [vmem:[#allocation2 + $0x1] sm:$0xff]
  %v215 = vld [vmem:[#allocation2 + $0x9] sm:$0xff]
  %v216 = vld [vmem:[#allocation2 + $0x11] sm:$0xff]
  %v217 = vld [vmem:[#allocation2 + $0x19] sm:$0xff]
  %v218 = vld [vmem:[#allocation2 + $0x21] sm:$0x3]
  %v219 = vld [vmem:[#allocation2 + $0x2] sm:$0xff]
  %v220 = vld [vmem:[#allocation2 + $0xa] sm:$0xff]
  %v221 = vld [vmem:[#allocation2 + $0x12] sm:$0xff]
  %v222 = vld [vmem:[#allocation2 + $0x1a] sm:$0xff]
  %v223 = vld [vmem:[#allocation2 + $0x22] sm:$0x3]
  %s224 = scalar_lea.vmem %s2, 384
  %v225 = vld [vmem:[%s224] sm:$0xff]
  %v226 = vld [vmem:[%s224 + $0x8] sm:$0xff]
  %v227 = vld [vmem:[%s224 + $0x10] sm:$0xff]
  %v228 = vld [vmem:[%s224 + $0x18] sm:$0xff]
  %v229 = vld [vmem:[%s224 + $0x20] sm:$0xff]
  %v230 = vld [vmem:[%s224 + $0x28] sm:$0xff]
  %v231 = vld [vmem:[%s224 + $0x30] sm:$0xff]
  %v232 = vld [vmem:[%s224 + $0x38] sm:$0xff]
  %v233 = vld [vmem:[%s224 + $0x40] sm:$0xff]
  %v234 = vld [vmem:[%s224 + $0x48] sm:$0xff]
  %v235 = vld [vmem:[%s224 + $0x50] sm:$0xff]
  %v236 = vld [vmem:[%s224 + $0x58] sm:$0xff]
  %v237 = vld [vmem:[%s224 + $0x60] sm:$0xff]
  %v238 = vld [vmem:[%s224 + $0x68] sm:$0xff]
  %v239 = vld [vmem:[%s224 + $0x70] sm:$0xff]
  %v240 = vld [vmem:[%s224 + $0x78] sm:$0xff]
  %v241 = vld [vmem:[%s224 + $0x80] sm:$0xff]
  %v242 = vld [vmem:[%s224 + $0x88] sm:$0xff]
  %v243 = vld [vmem:[%s224 + $0x90] sm:$0xff]
  %v244 = vld [vmem:[%s224 + $0x98] sm:$0xff]
  %v245 = vld [vmem:[%s224 + $0xa0] sm:$0xff]
  %v246 = vld [vmem:[%s224 + $0xa8] sm:$0xff]
  %v247 = vld [vmem:[%s224 + $0xb0] sm:$0xff]
  %v248 = vld [vmem:[%s224 + $0xb8] sm:$0xff]
  %v249 = vld [vmem:[%s224 + $0xc0] sm:$0xff]
  %v250 = vld [vmem:[%s224 + $0xc8] sm:$0xff]
  %v251 = vld [vmem:[%s224 + $0xd0] sm:$0xff]
  %v252 = vld [vmem:[%s224 + $0xd8] sm:$0xff]
  %v253 = vld [vmem:[%s224 + $0xe0] sm:$0xff]
  %v254 = vld [vmem:[%s224 + $0xe8] sm:$0xff]
  %v255 = vld [vmem:[%s224 + $0xf0] sm:$0xff]
  %v256 = vld [vmem:[%s224 + $0xf8] sm:$0xff]
  %v257 = vld [vmem:[%s224 + $0x100] sm:$0xff]
  %v258 = vld [vmem:[%s224 + $0x108] sm:$0xff]
  %v259 = vld [vmem:[%s224 + $0x110] sm:$0xff]
  %v260 = vld [vmem:[%s224 + $0x118] sm:$0xff]
  %v261 = vld [vmem:[%s224 + $0x120] sm:$0xff]
  %v262 = vld [vmem:[%s224 + $0x128] sm:$0xff]
  %v263 = vld [vmem:[%s224 + $0x130] sm:$0xff]
  %v264 = vld [vmem:[%s224 + $0x138] sm:$0xff]
  %v265 = vld [vmem:[%s224 + $0x140] sm:$0xff]
  %v266 = vld [vmem:[%s224 + $0x148] sm:$0xff]
  %v267 = vld [vmem:[%s224 + $0x150] sm:$0xff]
  %v268 = vld [vmem:[%s224 + $0x158] sm:$0xff]
  %v269 = vld [vmem:[%s224 + $0x160] sm:$0xff]
  %v270 = vld [vmem:[%s224 + $0x168] sm:$0xff]
  %v271 = vld [vmem:[%s224 + $0x170] sm:$0xff]
  %v272 = vld [vmem:[%s224 + $0x178] sm:$0xff]
  %s273 = scalar_lea.vmem %s3, 1
  %v274 = vld [vmem:[%s273] sm:$0x1]
  %v276 = vperm.slane %v274, 0
  %278 = vmatpush.msra.mxu0 %v240
  %279 = vmatpush.msra.mxu0 %v239
  %280 = vmatpush.msra.mxu0 %v238
  %281 = vmatpush.msra.mxu0 %v237
  %282 = vmatpush.msra.mxu0 %v236
  %283 = vmatpush.msra.mxu0 %v235
  %284 = vmatpush.msra.mxu0 %v234
  %285 = vmatpush.msra.mxu0 %v233
  %286 = vmatpush.msra.mxu0 %v232
  %287 = vmatpush.msra.mxu0 %v231
  %288 = vmatpush.msra.mxu0 %v230
  %289 = vmatpush.msra.mxu0 %v229
  %290 = vmatpush.msra.mxu0 %v228
  %291 = vmatpush.msra.mxu0 %v227
  %292 = vmatpush.msra.mxu0 %v226
  %293 = vmatpush.msra.mxu0 %v225
  %294 = vmatmul.f32.gmra.mxu0 %v209
  %v295 = vpop.f32.mrf.mxu0
  %v296 = vadd.f32 %v276, %v295
  %297 = vmatmul.f32.gmra.mxu0 %v210
  %v298 = vpop.f32.mrf.mxu0
  %v299 = vadd.f32 %v276, %v298
  %300 = vmatmul.f32.gmra.mxu0 %v211
  %v301 = vpop.f32.mrf.mxu0
  %v302 = vadd.f32 %v276, %v301
  %303 = vmatmul.f32.gmra.mxu0 %v212
  %v304 = vpop.f32.mrf.mxu0
  %v305 = vadd.f32 %v276, %v304
  %306 = vmatmul.f32.gmra.mxu0 %v213
  %v307 = vpop.f32.mrf.mxu0
  %v308 = vadd.f32 %v276, %v307
  %309 = vdwg.mxu0
  %310 = vmatpush.msra.mxu0 %v256
  %311 = vmatpush.msra.mxu0 %v255
  %312 = vmatpush.msra.mxu0 %v254
  %313 = vmatpush.msra.mxu0 %v253
  %314 = vmatpush.msra.mxu0 %v252
  %315 = vmatpush.msra.mxu0 %v251
  %316 = vmatpush.msra.mxu0 %v250
  %317 = vmatpush.msra.mxu0 %v249
  %318 = vmatpush.msra.mxu0 %v248
  %319 = vmatpush.msra.mxu0 %v247
  %320 = vmatpush.msra.mxu0 %v246
  %321 = vmatpush.msra.mxu0 %v245
  %322 = vmatpush.msra.mxu0 %v244
  %323 = vmatpush.msra.mxu0 %v243
  %324 = vmatpush.msra.mxu0 %v242
  %325 = vmatpush.msra.mxu0 %v241
  %326 = vmatmul.f32.gmra.mxu0 %v214
  %v327 = vpop.f32.mrf.mxu0
  %v328 = vadd.f32 %v296, %v327
  %329 = vmatmul.f32.gmra.mxu0 %v215
  %v330 = vpop.f32.mrf.mxu0
  %v331 = vadd.f32 %v299, %v330
  %332 = vmatmul.f32.gmra.mxu0 %v216
  %v333 = vpop.f32.mrf.mxu0
  %v334 = vadd.f32 %v302, %v333
  %335 = vmatmul.f32.gmra.mxu0 %v217
  %v336 = vpop.f32.mrf.mxu0
  %v337 = vadd.f32 %v305, %v336
  %338 = vmatmul.f32.gmra.mxu0 %v218
  %v339 = vpop.f32.mrf.mxu0
  %v340 = vadd.f32 %v308, %v339
  %341 = vdwg.mxu0
  %342 = vmatpush.msra.mxu0 %v272
  %343 = vmatpush.msra.mxu0 %v271
  %344 = vmatpush.msra.mxu0 %v270
  %345 = vmatpush.msra.mxu0 %v269
  %346 = vmatpush.msra.mxu0 %v268
  %347 = vmatpush.msra.mxu0 %v267
  %348 = vmatpush.msra.mxu0 %v266
  %349 = vmatpush.msra.mxu0 %v265
  %350 = vmatpush.msra.mxu0 %v264
  %351 = vmatpush.msra.mxu0 %v263
  %352 = vmatpush.msra.mxu0 %v262
  %353 = vmatpush.msra.mxu0 %v261
  %354 = vmatpush.msra.mxu0 %v260
  %355 = vmatpush.msra.mxu0 %v259
  %356 = vmatpush.msra.mxu0 %v258
  %357 = vmatpush.msra.mxu0 %v257
  %358 = vmatmul.f32.gmra.mxu0 %v219
  %v359 = vpop.f32.mrf.mxu0
  %v360 = vadd.f32 %v328, %v359
  %361 = vmatmul.f32.gmra.mxu0 %v220
  %v362 = vpop.f32.mrf.mxu0
  %v363 = vadd.f32 %v331, %v362
  %364 = vmatmul.f32.gmra.mxu0 %v221
  %v365 = vpop.f32.mrf.mxu0
  %v366 = vadd.f32 %v334, %v365
  %367 = vmatmul.f32.gmra.mxu0 %v222
  %v368 = vpop.f32.mrf.mxu0
  %v369 = vadd.f32 %v337, %v368
  %370 = vmatmul.f32.gmra.mxu0 %v223
  %v371 = vpop.f32.mrf.mxu0
  %v372 = vadd.f32 %v340, %v371
  %373 = vdwg.mxu0
  %v374 = vmax.f32 %v360, 0.0
  %v375 = vmax.f32 %v363, 0.0
  %376 = vst [vmem:[#allocation2 + $0x1] sm:$0xff] %v374
  %377 = vst [vmem:[#allocation2 + $0x9] sm:$0xff] %v375
  %v378 = vmax.f32 %v366, 0.0
  %v379 = vmax.f32 %v369, 0.0
  %v380 = vmax.f32 %v372, 0.0
  %381 = vst [vmem:[#allocation2 + $0x11] sm:$0xfc] %v378
  %382 = vst [vmem:[#allocation2 + $0x19] sm:$0xff] %v379
  %383 = vst [vmem:[#allocation2 + $0x21] sm:$0x3] %v380
  %v384 = vld [vmem:[#allocation2] sm:$0xff]
  %v385 = vld [vmem:[#allocation2 + $0x8] sm:$0xff]
  %v386 = vld [vmem:[#allocation2 + $0x10] sm:$0xff]
  %v387 = vld [vmem:[#allocation2 + $0x18] sm:$0xff]
  %v388 = vld [vmem:[#allocation2 + $0x20] sm:$0x3]
  %v389 = vld [vmem:[#allocation2 + $0x1] sm:$0xff]
  %v390 = vld [vmem:[#allocation2 + $0x9] sm:$0xff]
  %v391 = vld [vmem:[#allocation2 + $0x11] sm:$0xff]
  %v392 = vld [vmem:[#allocation2 + $0x19] sm:$0xff]
  %v393 = vld [vmem:[#allocation2 + $0x21] sm:$0x3]
  %v394 = vld [vmem:[#allocation2 + $0x2] sm:$0xff]
  %v395 = vld [vmem:[#allocation2 + $0xa] sm:$0xff]
  %v396 = vld [vmem:[#allocation2 + $0x12] sm:$0xff]
  %v397 = vld [vmem:[#allocation2 + $0x1a] sm:$0xff]
  %v398 = vld [vmem:[#allocation2 + $0x22] sm:$0x3]
  %s399 = scalar_lea.vmem %s2, 768
  %v400 = vld [vmem:[%s399] sm:$0xff]
  %v401 = vld [vmem:[%s399 + $0x8] sm:$0xff]
  %v402 = vld [vmem:[%s399 + $0x10] sm:$0xff]
  %v403 = vld [vmem:[%s399 + $0x18] sm:$0xff]
  %v404 = vld [vmem:[%s399 + $0x20] sm:$0xff]
  %v405 = vld [vmem:[%s399 + $0x28] sm:$0xff]
  %v406 = vld [vmem:[%s399 + $0x30] sm:$0xff]
  %v407 = vld [vmem:[%s399 + $0x38] sm:$0xff]
  %v408 = vld [vmem:[%s399 + $0x40] sm:$0xff]
  %v409 = vld [vmem:[%s399 + $0x48] sm:$0xff]
  %v410 = vld [vmem:[%s399 + $0x50] sm:$0xff]
  %v411 = vld [vmem:[%s399 + $0x58] sm:$0xff]
  %v412 = vld [vmem:[%s399 + $0x60] sm:$0xff]
  %v413 = vld [vmem:[%s399 + $0x68] sm:$0xff]
  %v414 = vld [vmem:[%s399 + $0x70] sm:$0xff]
  %v415 = vld [vmem:[%s399 + $0x78] sm:$0xff]
  %v416 = vld [vmem:[%s399 + $0x80] sm:$0xff]
  %v417 = vld [vmem:[%s399 + $0x88] sm:$0xff]
  %v418 = vld [vmem:[%s399 + $0x90] sm:$0xff]
  %v419 = vld [vmem:[%s399 + $0x98] sm:$0xff]
  %v420 = vld [vmem:[%s399 + $0xa0] sm:$0xff]
  %v421 = vld [vmem:[%s399 + $0xa8] sm:$0xff]
  %v422 = vld [vmem:[%s399 + $0xb0] sm:$0xff]
  %v423 = vld [vmem:[%s399 + $0xb8] sm:$0xff]
  %v424 = vld [vmem:[%s399 + $0xc0] sm:$0xff]
  %v425 = vld [vmem:[%s399 + $0xc8] sm:$0xff]
  %v426 = vld [vmem:[%s399 + $0xd0] sm:$0xff]
  %v427 = vld [vmem:[%s399 + $0xd8] sm:$0xff]
  %v428 = vld [vmem:[%s399 + $0xe0] sm:$0xff]
  %v429 = vld [vmem:[%s399 + $0xe8] sm:$0xff]
  %v430 = vld [vmem:[%s399 + $0xf0] sm:$0xff]
  %v431 = vld [vmem:[%s399 + $0xf8] sm:$0xff]
  %v432 = vld [vmem:[%s399 + $0x100] sm:$0xff]
  %v433 = vld [vmem:[%s399 + $0x108] sm:$0xff]
  %v434 = vld [vmem:[%s399 + $0x110] sm:$0xff]
  %v435 = vld [vmem:[%s399 + $0x118] sm:$0xff]
  %v436 = vld [vmem:[%s399 + $0x120] sm:$0xff]
  %v437 = vld [vmem:[%s399 + $0x128] sm:$0xff]
  %v438 = vld [vmem:[%s399 + $0x130] sm:$0xff]
  %v439 = vld [vmem:[%s399 + $0x138] sm:$0xff]
  %v440 = vld [vmem:[%s399 + $0x140] sm:$0xff]
  %v441 = vld [vmem:[%s399 + $0x148] sm:$0xff]
  %v442 = vld [vmem:[%s399 + $0x150] sm:$0xff]
  %v443 = vld [vmem:[%s399 + $0x158] sm:$0xff]
  %v444 = vld [vmem:[%s399 + $0x160] sm:$0xff]
  %v445 = vld [vmem:[%s399 + $0x168] sm:$0xff]
  %v446 = vld [vmem:[%s399 + $0x170] sm:$0xff]
  %v447 = vld [vmem:[%s399 + $0x178] sm:$0xff]
  %s448 = scalar_lea.vmem %s3, 2
  %v449 = vld [vmem:[%s448] sm:$0x1]
  %v451 = vperm.slane %v449, 0
  %453 = vmatpush.msra.mxu0 %v415
  %454 = vmatpush.msra.mxu0 %v414
  %455 = vmatpush.msra.mxu0 %v413
  %456 = vmatpush.msra.mxu0 %v412
  %457 = vmatpush.msra.mxu0 %v411
  %458 = vmatpush.msra.mxu0 %v410
  %459 = vmatpush.msra.mxu0 %v409
  %460 = vmatpush.msra.mxu0 %v408
  %461 = vmatpush.msra.mxu0 %v407
  %462 = vmatpush.msra.mxu0 %v406
  %463 = vmatpush.msra.mxu0 %v405
  %464 = vmatpush.msra.mxu0 %v404
  %465 = vmatpush.msra.mxu0 %v403
  %466 = vmatpush.msra.mxu0 %v402
  %467 = vmatpush.msra.mxu0 %v401
  %468 = vmatpush.msra.mxu0 %v400
  %469 = vmatmul.f32.gmra.mxu0 %v384
  %v470 = vpop.f32.mrf.mxu0
  %v471 = vadd.f32 %v451, %v470
  %472 = vmatmul.f32.gmra.mxu0 %v385
  %v473 = vpop.f32.mrf.mxu0
  %v474 = vadd.f32 %v451, %v473
  %475 = vmatmul.f32.gmra.mxu0 %v386
  %v476 = vpop.f32.mrf.mxu0
  %v477 = vadd.f32 %v451, %v476
  %478 = vmatmul.f32.gmra.mxu0 %v387
  %v479 = vpop.f32.mrf.mxu0
  %v480 = vadd.f32 %v451, %v479
  %481 = vmatmul.f32.gmra.mxu0 %v388
  %v482 = vpop.f32.mrf.mxu0
  %v483 = vadd.f32 %v451, %v482
  %484 = vdwg.mxu0
  %485 = vmatpush.msra.mxu0 %v431
  %486 = vmatpush.msra.mxu0 %v430
  %487 = vmatpush.msra.mxu0 %v429
  %488 = vmatpush.msra.mxu0 %v428
  %489 = vmatpush.msra.mxu0 %v427
  %490 = vmatpush.msra.mxu0 %v426
  %491 = vmatpush.msra.mxu0 %v425
  %492 = vmatpush.msra.mxu0 %v424
  %493 = vmatpush.msra.mxu0 %v423
  %494 = vmatpush.msra.mxu0 %v422
  %495 = vmatpush.msra.mxu0 %v421
  %496 = vmatpush.msra.mxu0 %v420
  %497 = vmatpush.msra.mxu0 %v419
  %498 = vmatpush.msra.mxu0 %v418
  %499 = vmatpush.msra.mxu0 %v417
  %500 = vmatpush.msra.mxu0 %v416
  %501 = vmatmul.f32.gmra.mxu0 %v389
  %v502 = vpop.f32.mrf.mxu0
  %v503 = vadd.f32 %v471, %v502
  %504 = vmatmul.f32.gmra.mxu0 %v390
  %v505 = vpop.f32.mrf.mxu0
  %v506 = vadd.f32 %v474, %v505
  %507 = vmatmul.f32.gmra.mxu0 %v391
  %v508 = vpop.f32.mrf.mxu0
  %v509 = vadd.f32 %v477, %v508
  %510 = vmatmul.f32.gmra.mxu0 %v392
  %v511 = vpop.f32.mrf.mxu0
  %v512 = vadd.f32 %v480, %v511
  %513 = vmatmul.f32.gmra.mxu0 %v393
  %v514 = vpop.f32.mrf.mxu0
  %v515 = vadd.f32 %v483, %v514
  %516 = vdwg.mxu0
  %517 = vmatpush.msra.mxu0 %v447
  %518 = vmatpush.msra.mxu0 %v446
  %519 = vmatpush.msra.mxu0 %v445
  %520 = vmatpush.msra.mxu0 %v444
  %521 = vmatpush.msra.mxu0 %v443
  %522 = vmatpush.msra.mxu0 %v442
  %523 = vmatpush.msra.mxu0 %v441
  %524 = vmatpush.msra.mxu0 %v440
  %525 = vmatpush.msra.mxu0 %v439
  %526 = vmatpush.msra.mxu0 %v438
  %527 = vmatpush.msra.mxu0 %v437
  %528 = vmatpush.msra.mxu0 %v436
  %529 = vmatpush.msra.mxu0 %v435
  %530 = vmatpush.msra.mxu0 %v434
  %531 = vmatpush.msra.mxu0 %v433
  %532 = vmatpush.msra.mxu0 %v432
  %533 = vmatmul.f32.gmra.mxu0 %v394
  %v534 = vpop.f32.mrf.mxu0
  %v535 = vadd.f32 %v503, %v534
  %536 = vmatmul.f32.gmra.mxu0 %v395
  %v537 = vpop.f32.mrf.mxu0
  %v538 = vadd.f32 %v506, %v537
  %539 = vmatmul.f32.gmra.mxu0 %v396
  %v540 = vpop.f32.mrf.mxu0
  %v541 = vadd.f32 %v509, %v540
  %542 = vmatmul.f32.gmra.mxu0 %v397
  %v543 = vpop.f32.mrf.mxu0
  %v544 = vadd.f32 %v512, %v543
  %545 = vmatmul.f32.gmra.mxu0 %v398
  %v546 = vpop.f32.mrf.mxu0
  %v547 = vadd.f32 %v515, %v546
  %548 = vdwg.mxu0
  %v549 = vadd.f32 %v185, %v535
  %v550 = vadd.f32 %v188, %v538
  %v551 = vadd.f32 %v191, %v541
  %v552 = vadd.f32 %v194, %v544
  %v553 = vadd.f32 %v197, %v547
  %v554 = vld [vmem:[%s4] sm:$0xff]
  %v555 = vld [vmem:[%s4 + $0x8] sm:$0xff]
  %v556 = vld [vmem:[%s1] sm:$0xff]
  %vm557 = vcmask 64512
  %v559 = vsel %vm557, %v554, 0
  %v562 = vsel %vm557, %v555, 0
  %564 = vmatpush.msra.mxu0 0.0
  %565 = vmatpush.msra.mxu0 0.0
  %566 = vmatpush.msra.mxu0 0.0
  %567 = vmatpush.msra.mxu0 0.0
  %568 = vmatpush.msra.mxu0 0.0
  %569 = vmatpush.msra.mxu0 0.0
  %570 = vmatpush.msra.mxu0 0.0
  %571 = vmatpush.msra.mxu0 0.0
  %572 = vmatpush.msra.mxu0 0.0
  %573 = vmatpush.msra.mxu0 0.0
  %574 = vmatpush.msra.mxu0 0.0
  %575 = vmatpush.msra.mxu0 0.0
  %576 = vmatpush.msra.mxu0 0.0
  %577 = vmatpush.msra.mxu0 0.0
  %578 = vmatpush.msra.mxu0 0.0
  %579 = vmatpush.msra.mxu0 %v556
  %580 = vmatmul.f32.gmra.mxu0 %v559
  %v581 = vpop.f32.mrf.mxu0
  %v582 = vadd.f32 0.0, %v581
  %583 = vmatmul.f32.gmra.mxu0 %v562
  %v584 = vpop.f32.mrf.mxu0
  %v585 = vadd.f32 0.0, %v584
  %586 = vdwg.mxu0
  %v587 = vld [vmem:[%s5] sm:$0xff]
  %v588 = vld [vmem:[%s5 + $0x8] sm:$0xff]
  %v589 = vld [vmem:[%s5 + $0x10] sm:$0xff]
  %v590 = vld [vmem:[%s5 + $0x18] sm:$0xff]
  %v591 = vld [vmem:[%s5 + $0x20] sm:$0xff]
  %v592 = vld [vmem:[%s5 + $0x28] sm:$0xff]
  %v593 = vld [vmem:[%s5 + $0x30] sm:$0xff]
  %v594 = vld [vmem:[%s5 + $0x38] sm:$0xff]
  %vm595 = vcmask 523264
  %v597 = vsel %vm595, %v582, 0
  %v600 = vsel %vm595, %v585, 0
  %602 = vmatpush.msra.mxu0 0.0
  %603 = vmatpush.msra.mxu0 0.0
  %604 = vmatpush.msra.mxu0 0.0
  %605 = vmatpush.msra.mxu0 0.0
  %606 = vmatpush.msra.mxu0 0.0
  %607 = vmatpush.msra.mxu0 0.0
  %608 = vmatpush.msra.mxu0 0.0
  %609 = vmatpush.msra.mxu0 0.0
  %610 = vmatpush.msra.mxu0 %v594
  %611 = vmatpush.msra.mxu0 %v593
  %612 = vmatpush.msra.mxu0 %v592
  %613 = vmatpush.msra.mxu0 %v591
  %614 = vmatpush.msra.mxu0 %v590
  %615 = vmatpush.msra.mxu0 %v589
  %616 = vmatpush.msra.mxu0 %v588
  %617 = vmatpush.msra.mxu0 %v587
  %618 = vmatmul.f32.gmra.mxu0 %v597
  %v619 = vpop.f32.mrf.mxu0
  %v620 = vadd.f32 0.0, %v619
  %621 = vmatmul.f32.gmra.mxu0 %v600
  %v622 = vpop.f32.mrf.mxu0
  %v623 = vadd.f32 0.0, %v622
  %624 = vdwg.mxu0
  %v625 = vadd.f32 %v549, %v620
  %v626 = vadd.f32 %v550, %v623
  %v627 = vmax.f32 %v625, 0.0
  %v628 = vmax.f32 %v626, 0.0
  %629 = vst [vmem:[#allocation2 + $0x1] sm:$0xff] %v627
  %630 = vst [vmem:[#allocation2 + $0x9] sm:$0xff] %v628
  %v631 = vld [vmem:[%s4] sm:$0xff]
  %v632 = vld [vmem:[%s4 + $0x8] sm:$0xff]
  %s633 = scalar_lea.vmem %s1, 8
  %v634 = vld [vmem:[%s633] sm:$0xff]
  %v636 = vsel %vm557, %v631, 0
  %v639 = vsel %vm557, %v632, 0
  %641 = vmatpush.msra.mxu0 0.0
  %642 = vmatpush.msra.mxu0 0.0
  %643 = vmatpush.msra.mxu0 0.0
  %644 = vmatpush.msra.mxu0 0.0
  %645 = vmatpush.msra.mxu0 0.0
  %646 = vmatpush.msra.mxu0 0.0
  %647 = vmatpush.msra.mxu0 0.0
  %648 = vmatpush.msra.mxu0 0.0
  %649 = vmatpush.msra.mxu0 0.0
  %650 = vmatpush.msra.mxu0 0.0
  %651 = vmatpush.msra.mxu0 0.0
  %652 = vmatpush.msra.mxu0 0.0
  %653 = vmatpush.msra.mxu0 0.0
  %654 = vmatpush.msra.mxu0 0.0
  %655 = vmatpush.msra.mxu0 0.0
  %656 = vmatpush.msra.mxu0 %v634
  %657 = vmatmul.f32.gmra.mxu0 %v636
  %v658 = vpop.f32.mrf.mxu0
  %v659 = vadd.f32 0.0, %v658
  %660 = vmatmul.f32.gmra.mxu0 %v639
  %v661 = vpop.f32.mrf.mxu0
  %v662 = vadd.f32 0.0, %v661
  %663 = vdwg.mxu0
  %v664 = vld [vmem:[%s5] sm:$0xff]
  %v665 = vld [vmem:[%s5 + $0x8] sm:$0xff]
  %v666 = vld [vmem:[%s5 + $0x10] sm:$0xff]
  %v667 = vld [vmem:[%s5 + $0x18] sm:$0xff]
  %v668 = vld [vmem:[%s5 + $0x20] sm:$0xff]
  %v669 = vld [vmem:[%s5 + $0x28] sm:$0xff]
  %v670 = vld [vmem:[%s5 + $0x30] sm:$0xff]
  %v671 = vld [vmem:[%s5 + $0x38] sm:$0xff]
  %v673 = vsel %vm595, %v659, 0
  %v676 = vsel %vm595, %v662, 0
  %678 = vmatpush.msra.mxu0 0.0
  %679 = vmatpush.msra.mxu0 0.0
  %680 = vmatpush.msra.mxu0 0.0
  %681 = vmatpush.msra.mxu0 0.0
  %682 = vmatpush.msra.mxu0 0.0
  %683 = vmatpush.msra.mxu0 0.0
  %684 = vmatpush.msra.mxu0 0.0
  %685 = vmatpush.msra.mxu0 0.0
  %686 = vmatpush.msra.mxu0 %v671
  %687 = vmatpush.msra.mxu0 %v670
  %688 = vmatpush.msra.mxu0 %v669
  %689 = vmatpush.msra.mxu0 %v668
  %690 = vmatpush.msra.mxu0 %v667
  %691 = vmatpush.msra.mxu0 %v666
  %692 = vmatpush.msra.mxu0 %v665
  %693 = vmatpush.msra.mxu0 %v664
  %694 = vmatmul.f32.gmra.mxu0 %v673
  %v695 = vpop.f32.mrf.mxu0
  %v696 = vadd.f32 0.0, %v695
  %697 = vmatmul.f32.gmra.mxu0 %v676
  %v698 = vpop.f32.mrf.mxu0
  %v699 = vadd.f32 0.0, %v698
  %700 = vdwg.mxu0
  %vm703 = vcmask 1041408
  %v704 = vrot.slane %v696, 6
  %v705 = vrot.slane %v699, 6
  %v706 = vsel %vm703, %v704, %v705
  %v710 = vadd.f32 %v551, %v704
  %v711 = vadd.f32 %v552, %v706
  %v712 = vadd.f32 %v553, %v705
  %v713 = vmax.f32 %v710, 0.0
  %v714 = vmax.f32 %v711, 0.0
  %v715 = vmax.f32 %v712, 0.0
  %716 = vst [vmem:[#allocation2 + $0x11] sm:$0xfc] %v713
  %717 = vst [vmem:[#allocation2 + $0x19] sm:$0xff] %v714
  %718 = vst [vmem:[#allocation2 + $0x21] sm:$0x3] %v715
  %v719 = vld [vmem:[#allocation2] sm:$0xff]
  %v720 = vld [vmem:[#allocation2 + $0x8] sm:$0xff]
  %v721 = vld [vmem:[#allocation2 + $0x10] sm:$0xff]
  %v722 = vld [vmem:[#allocation2 + $0x18] sm:$0xff]
  %v723 = vld [vmem:[#allocation2 + $0x20] sm:$0x3]
  %v724 = vld [vmem:[#allocation2 + $0x1] sm:$0xff]
  %v725 = vld [vmem:[#allocation2 + $0x9] sm:$0xff]
  %v726 = vld [vmem:[#allocation2 + $0x11] sm:$0xff]
  %v727 = vld [vmem:[#allocation2 + $0x19] sm:$0xff]
  %v728 = vld [vmem:[#allocation2 + $0x21] sm:$0x3]
  %v729 = vld [vmem:[#allocation2 + $0x2] sm:$0xff]
  %v730 = vld [vmem:[#allocation2 + $0xa] sm:$0xff]
  %v731 = vld [vmem:[#allocation2 + $0x12] sm:$0xff]
  %v732 = vld [vmem:[#allocation2 + $0x1a] sm:$0xff]
  %v733 = vld [vmem:[#allocation2 + $0x22] sm:$0x3]
  %s734 = scalar_lea.vmem %s2, 1152
  %v735 = vld [vmem:[%s734] sm:$0xff]
  %v736 = vld [vmem:[%s734 + $0x8] sm:$0xff]
  %v737 = vld [vmem:[%s734 + $0x10] sm:$0xff]
  %v738 = vld [vmem:[%s734 + $0x18] sm:$0xff]
  %v739 = vld [vmem:[%s734 + $0x20] sm:$0xff]
  %v740 = vld [vmem:[%s734 + $0x28] sm:$0xff]
  %v741 = vld [vmem:[%s734 + $0x30] sm:$0xff]
  %v742 = vld [vmem:[%s734 + $0x38] sm:$0xff]
  %v743 = vld [vmem:[%s734 + $0x40] sm:$0xff]
  %v744 = vld [vmem:[%s734 + $0x48] sm:$0xff]
  %v745 = vld [vmem:[%s734 + $0x50] sm:$0xff]
  %v746 = vld [vmem:[%s734 + $0x58] sm:$0xff]
  %v747 = vld [vmem:[%s734 + $0x60] sm:$0xff]
  %v748 = vld [vmem:[%s734 + $0x68] sm:$0xff]
  %v749 = vld [vmem:[%s734 + $0x70] sm:$0xff]
  %v750 = vld [vmem:[%s734 + $0x78] sm:$0xff]
  %v751 = vld [vmem:[%s734 + $0x80] sm:$0xff]
  %v752 = vld [vmem:[%s734 + $0x88] sm:$0xff]
  %v753 = vld [vmem:[%s734 + $0x90] sm:$0xff]
  %v754 = vld [vmem:[%s734 + $0x98] sm:$0xff]
  %v755 = vld [vmem:[%s734 + $0xa0] sm:$0xff]
  %v756 = vld [vmem:[%s734 + $0xa8] sm:$0xff]
  %v757 = vld [vmem:[%s734 + $0xb0] sm:$0xff]
  %v758 = vld [vmem:[%s734 + $0xb8] sm:$0xff]
  %v759 = vld [vmem:[%s734 + $0xc0] sm:$0xff]
  %v760 = vld [vmem:[%s734 + $0xc8] sm:$0xff]
  %v761 = vld [vmem:[%s734 + $0xd0] sm:$0xff]
  %v762 = vld [vmem:[%s734 + $0xd8] sm:$0xff]
  %v763 = vld [vmem:[%s734 + $0xe0] sm:$0xff]
  %v764 = vld [vmem:[%s734 + $0xe8] sm:$0xff]
  %v765 = vld [vmem:[%s734 + $0xf0] sm:$0xff]
  %v766 = vld [vmem:[%s734 + $0xf8] sm:$0xff]
  %v767 = vld [vmem:[%s734 + $0x100] sm:$0xff]
  %v768 = vld [vmem:[%s734 + $0x108] sm:$0xff]
  %v769 = vld [vmem:[%s734 + $0x110] sm:$0xff]
  %v770 = vld [vmem:[%s734 + $0x118] sm:$0xff]
  %v771 = vld [vmem:[%s734 + $0x120] sm:$0xff]
  %v772 = vld [vmem:[%s734 + $0x128] sm:$0xff]
  %v773 = vld [vmem:[%s734 + $0x130] sm:$0xff]
  %v774 = vld [vmem:[%s734 + $0x138] sm:$0xff]
  %v775 = vld [vmem:[%s734 + $0x140] sm:$0xff]
  %v776 = vld [vmem:[%s734 + $0x148] sm:$0xff]
  %v777 = vld [vmem:[%s734 + $0x150] sm:$0xff]
  %v778 = vld [vmem:[%s734 + $0x158] sm:$0xff]
  %v779 = vld [vmem:[%s734 + $0x160] sm:$0xff]
  %v780 = vld [vmem:[%s734 + $0x168] sm:$0xff]
  %v781 = vld [vmem:[%s734 + $0x170] sm:$0xff]
  %v782 = vld [vmem:[%s734 + $0x178] sm:$0xff]
  %s783 = scalar_lea.vmem %s3, 3
  %v784 = vld [vmem:[%s783] sm:$0x1]
  %v786 = vperm.slane %v784, 0
  %788 = vmatpush.msra.mxu0 %v750
  %789 = vmatpush.msra.mxu0 %v749
  %790 = vmatpush.msra.mxu0 %v748
  %791 = vmatpush.msra.mxu0 %v747
  %792 = vmatpush.msra.mxu0 %v746
  %793 = vmatpush.msra.mxu0 %v745
  %794 = vmatpush.msra.mxu0 %v744
  %795 = vmatpush.msra.mxu0 %v743
  %796 = vmatpush.msra.mxu0 %v742
  %797 = vmatpush.msra.mxu0 %v741
  %798 = vmatpush.msra.mxu0 %v740
  %799 = vmatpush.msra.mxu0 %v739
  %800 = vmatpush.msra.mxu0 %v738
  %801 = vmatpush.msra.mxu0 %v737
  %802 = vmatpush.msra.mxu0 %v736
  %803 = vmatpush.msra.mxu0 %v735
  %804 = vmatmul.f32.gmra.mxu0 %v719
  %v805 = vpop.f32.mrf.mxu0
  %v806 = vadd.f32 %v786, %v805
  %807 = vmatmul.f32.gmra.mxu0 %v720
  %v808 = vpop.f32.mrf.mxu0
  %v809 = vadd.f32 %v786, %v808
  %810 = vmatmul.f32.gmra.mxu0 %v721
  %v811 = vpop.f32.mrf.mxu0
  %v812 = vadd.f32 %v786, %v811
  %813 = vmatmul.f32.gmra.mxu0 %v722
  %v814 = vpop.f32.mrf.mxu0
  %v815 = vadd.f32 %v786, %v814
  %816 = vmatmul.f32.gmra.mxu0 %v723
  %v817 = vpop.f32.mrf.mxu0
  %v818 = vadd.f32 %v786, %v817
  %819 = vdwg.mxu0
  %820 = vmatpush.msra.mxu0 %v766
  %821 = vmatpush.msra.mxu0 %v765
  %822 = vmatpush.msra.mxu0 %v764
  %823 = vmatpush.msra.mxu0 %v763
  %824 = vmatpush.msra.mxu0 %v762
  %825 = vmatpush.msra.mxu0 %v761
  %826 = vmatpush.msra.mxu0 %v760
  %827 = vmatpush.msra.mxu0 %v759
  %828 = vmatpush.msra.mxu0 %v758
  %829 = vmatpush.msra.mxu0 %v757
  %830 = vmatpush.msra.mxu0 %v756
  %831 = vmatpush.msra.mxu0 %v755
  %832 = vmatpush.msra.mxu0 %v754
  %833 = vmatpush.msra.mxu0 %v753
  %834 = vmatpush.msra.mxu0 %v752
  %835 = vmatpush.msra.mxu0 %v751
  %836 = vmatmul.f32.gmra.mxu0 %v724
  %v837 = vpop.f32.mrf.mxu0
  %v838 = vadd.f32 %v806, %v837
  %839 = vmatmul.f32.gmra.mxu0 %v725
  %v840 = vpop.f32.mrf.mxu0
  %v841 = vadd.f32 %v809, %v840
  %842 = vmatmul.f32.gmra.mxu0 %v726
  %v843 = vpop.f32.mrf.mxu0
  %v844 = vadd.f32 %v812, %v843
  %845 = vmatmul.f32.gmra.mxu0 %v727
  %v846 = vpop.f32.mrf.mxu0
  %v847 = vadd.f32 %v815, %v846
  %848 = vmatmul.f32.gmra.mxu0 %v728
  %v849 = vpop.f32.mrf.mxu0
  %v850 = vadd.f32 %v818, %v849
  %851 = vdwg.mxu0
  %852 = vmatpush.msra.mxu0 %v782
  %853 = vmatpush.msra.mxu0 %v781
  %854 = vmatpush.msra.mxu0 %v780
  %855 = vmatpush.msra.mxu0 %v779
  %856 = vmatpush.msra.mxu0 %v778
  %857 = vmatpush.msra.mxu0 %v777
  %858 = vmatpush.msra.mxu0 %v776
  %859 = vmatpush.msra.mxu0 %v775
  %860 = vmatpush.msra.mxu0 %v774
  %861 = vmatpush.msra.mxu0 %v773
  %862 = vmatpush.msra.mxu0 %v772
  %863 = vmatpush.msra.mxu0 %v771
  %864 = vmatpush.msra.mxu0 %v770
  %865 = vmatpush.msra.mxu0 %v769
  %866 = vmatpush.msra.mxu0 %v768
  %867 = vmatpush.msra.mxu0 %v767
  %868 = vmatmul.f32.gmra.mxu0 %v729
  %v869 = vpop.f32.mrf.mxu0
  %v870 = vadd.f32 %v838, %v869
  %871 = vmatmul.f32.gmra.mxu0 %v730
  %v872 = vpop.f32.mrf.mxu0
  %v873 = vadd.f32 %v841, %v872
  %874 = vmatmul.f32.gmra.mxu0 %v731
  %v875 = vpop.f32.mrf.mxu0
  %v876 = vadd.f32 %v844, %v875
  %877 = vmatmul.f32.gmra.mxu0 %v732
  %v878 = vpop.f32.mrf.mxu0
  %v879 = vadd.f32 %v847, %v878
  %880 = vmatmul.f32.gmra.mxu0 %v733
  %v881 = vpop.f32.mrf.mxu0
  %v882 = vadd.f32 %v850, %v881
  %883 = vdwg.mxu0
  %v884 = vmax.f32 %v870, 0.0
  %v885 = vmax.f32 %v873, 0.0
  %886 = vst [vmem:[#allocation2 + $0x1] sm:$0xff] %v884
  %887 = vst [vmem:[#allocation2 + $0x9] sm:$0xff] %v885
  %v888 = vmax.f32 %v876, 0.0
  %v889 = vmax.f32 %v879, 0.0
  %v890 = vmax.f32 %v882, 0.0
  %891 = vst [vmem:[#allocation2 + $0x11] sm:$0xfc] %v888
  %892 = vst [vmem:[#allocation2 + $0x19] sm:$0xff] %v889
  %893 = vst [vmem:[#allocation2 + $0x21] sm:$0x3] %v890
  %v894 = vld [vmem:[#allocation2] sm:$0xff]
  %v895 = vld [vmem:[#allocation2 + $0x8] sm:$0xff]
  %v896 = vld [vmem:[#allocation2 + $0x10] sm:$0xff]
  %v897 = vld [vmem:[#allocation2 + $0x18] sm:$0xff]
  %v898 = vld [vmem:[#allocation2 + $0x20] sm:$0x3]
  %v899 = vld [vmem:[#allocation2 + $0x1] sm:$0xff]
  %v900 = vld [vmem:[#allocation2 + $0x9] sm:$0xff]
  %v901 = vld [vmem:[#allocation2 + $0x11] sm:$0xff]
  %v902 = vld [vmem:[#allocation2 + $0x19] sm:$0xff]
  %v903 = vld [vmem:[#allocation2 + $0x21] sm:$0x3]
  %v904 = vld [vmem:[#allocation2 + $0x2] sm:$0xff]
  %v905 = vld [vmem:[#allocation2 + $0xa] sm:$0xff]
  %v906 = vld [vmem:[#allocation2 + $0x12] sm:$0xff]
  %v907 = vld [vmem:[#allocation2 + $0x1a] sm:$0xff]
  %v908 = vld [vmem:[#allocation2 + $0x22] sm:$0x3]
  %s909 = scalar_lea.vmem %s2, 1536
  %v910 = vld [vmem:[%s909] sm:$0xff]
  %v911 = vld [vmem:[%s909 + $0x8] sm:$0xff]
  %v912 = vld [vmem:[%s909 + $0x10] sm:$0xff]
  %v913 = vld [vmem:[%s909 + $0x18] sm:$0xff]
  %v914 = vld [vmem:[%s909 + $0x20] sm:$0xff]
  %v915 = vld [vmem:[%s909 + $0x28] sm:$0xff]
  %v916 = vld [vmem:[%s909 + $0x30] sm:$0xff]
  %v917 = vld [vmem:[%s909 + $0x38] sm:$0xff]
  %v918 = vld [vmem:[%s909 + $0x40] sm:$0xff]
  %v919 = vld [vmem:[%s909 + $0x48] sm:$0xff]
  %v920 = vld [vmem:[%s909 + $0x50] sm:$0xff]
  %v921 = vld [vmem:[%s909 + $0x58] sm:$0xff]
  %v922 = vld [vmem:[%s909 + $0x60] sm:$0xff]
  %v923 = vld [vmem:[%s909 + $0x68] sm:$0xff]
  %v924 = vld [vmem:[%s909 + $0x70] sm:$0xff]
  %v925 = vld [vmem:[%s909 + $0x78] sm:$0xff]
  %v926 = vld [vmem:[%s909 + $0x80] sm:$0xff]
  %v927 = vld [vmem:[%s909 + $0x88] sm:$0xff]
  %v928 = vld [vmem:[%s909 + $0x90] sm:$0xff]
  %v929 = vld [vmem:[%s909 + $0x98] sm:$0xff]
  %v930 = vld [vmem:[%s909 + $0xa0] sm:$0xff]
  %v931 = vld [vmem:[%s909 + $0xa8] sm:$0xff]
  %v932 = vld [vmem:[%s909 + $0xb0] sm:$0xff]
  %v933 = vld [vmem:[%s909 + $0xb8] sm:$0xff]
  %v934 = vld [vmem:[%s909 + $0xc0] sm:$0xff]
  %v935 = vld [vmem:[%s909 + $0xc8] sm:$0xff]
  %v936 = vld [vmem:[%s909 + $0xd0] sm:$0xff]
  %v937 = vld [vmem:[%s909 + $0xd8] sm:$0xff]
  %v938 = vld [vmem:[%s909 + $0xe0] sm:$0xff]
  %v939 = vld [vmem:[%s909 + $0xe8] sm:$0xff]
  %v940 = vld [vmem:[%s909 + $0xf0] sm:$0xff]
  %v941 = vld [vmem:[%s909 + $0xf8] sm:$0xff]
  %v942 = vld [vmem:[%s909 + $0x100] sm:$0xff]
  %v943 = vld [vmem:[%s909 + $0x108] sm:$0xff]
  %v944 = vld [vmem:[%s909 + $0x110] sm:$0xff]
  %v945 = vld [vmem:[%s909 + $0x118] sm:$0xff]
  %v946 = vld [vmem:[%s909 + $0x120] sm:$0xff]
  %v947 = vld [vmem:[%s909 + $0x128] sm:$0xff]
  %v948 = vld [vmem:[%s909 + $0x130] sm:$0xff]
  %v949 = vld [vmem:[%s909 + $0x138] sm:$0xff]
  %v950 = vld [vmem:[%s909 + $0x140] sm:$0xff]
  %v951 = vld [vmem:[%s909 + $0x148] sm:$0xff]
  %v952 = vld [vmem:[%s909 + $0x150] sm:$0xff]
  %v953 = vld [vmem:[%s909 + $0x158] sm:$0xff]
  %v954 = vld [vmem:[%s909 + $0x160] sm:$0xff]
  %v955 = vld [vmem:[%s909 + $0x168] sm:$0xff]
  %v956 = vld [vmem:[%s909 + $0x170] sm:$0xff]
  %v957 = vld [vmem:[%s909 + $0x178] sm:$0xff]
  %s958 = scalar_lea.vmem %s3, 4
  %v959 = vld [vmem:[%s958] sm:$0x1]
  %v961 = vperm.slane %v959, 0
  %963 = vmatpush.msra.mxu0 %v925
  %964 = vmatpush.msra.mxu0 %v924
  %965 = vmatpush.msra.mxu0 %v923
  %966 = vmatpush.msra.mxu0 %v922
  %967 = vmatpush.msra.mxu0 %v921
  %968 = vmatpush.msra.mxu0 %v920
  %969 = vmatpush.msra.mxu0 %v919
  %970 = vmatpush.msra.mxu0 %v918
  %971 = vmatpush.msra.mxu0 %v917
  %972 = vmatpush.msra.mxu0 %v916
  %973 = vmatpush.msra.mxu0 %v915
  %974 = vmatpush.msra.mxu0 %v914
  %975 = vmatpush.msra.mxu0 %v913
  %976 = vmatpush.msra.mxu0 %v912
  %977 = vmatpush.msra.mxu0 %v911
  %978 = vmatpush.msra.mxu0 %v910
  %979 = vmatmul.f32.gmra.mxu0 %v894
  %v980 = vpop.f32.mrf.mxu0
  %v981 = vadd.f32 %v961, %v980
  %982 = vmatmul.f32.gmra.mxu0 %v895
  %v983 = vpop.f32.mrf.mxu0
  %v984 = vadd.f32 %v961, %v983
  %985 = vmatmul.f32.gmra.mxu0 %v896
  %v986 = vpop.f32.mrf.mxu0
  %v987 = vadd.f32 %v961, %v986
  %988 = vmatmul.f32.gmra.mxu0 %v897
  %v989 = vpop.f32.mrf.mxu0
  %v990 = vadd.f32 %v961, %v989
  %991 = vmatmul.f32.gmra.mxu0 %v898
  %v992 = vpop.f32.mrf.mxu0
  %v993 = vadd.f32 %v961, %v992
  %994 = vdwg.mxu0
  %995 = vmatpush.msra.mxu0 %v941
  %996 = vmatpush.msra.mxu0 %v940
  %997 = vmatpush.msra.mxu0 %v939
  %998 = vmatpush.msra.mxu0 %v938
  %999 = vmatpush.msra.mxu0 %v937
  %1000 = vmatpush.msra.mxu0 %v936
  %1001 = vmatpush.msra.mxu0 %v935
  %1002 = vmatpush.msra.mxu0 %v934
  %1003 = vmatpush.msra.mxu0 %v933
  %1004 = vmatpush.msra.mxu0 %v932
  %1005 = vmatpush.msra.mxu0 %v931
  %1006 = vmatpush.msra.mxu0 %v930
  %1007 = vmatpush.msra.mxu0 %v929
  %1008 = vmatpush.msra.mxu0 %v928
  %1009 = vmatpush.msra.mxu0 %v927
  %1010 = vmatpush.msra.mxu0 %v926
  %1011 = vmatmul.f32.gmra.mxu0 %v899
  %v1012 = vpop.f32.mrf.mxu0
  %v1013 = vadd.f32 %v981, %v1012
  %1014 = vmatmul.f32.gmra.mxu0 %v900
  %v1015 = vpop.f32.mrf.mxu0
  %v1016 = vadd.f32 %v984, %v1015
  %1017 = vmatmul.f32.gmra.mxu0 %v901
  %v1018 = vpop.f32.mrf.mxu0
  %v1019 = vadd.f32 %v987, %v1018
  %1020 = vmatmul.f32.gmra.mxu0 %v902
  %v1021 = vpop.f32.mrf.mxu0
  %v1022 = vadd.f32 %v990, %v1021
  %1023 = vmatmul.f32.gmra.mxu0 %v903
  %v1024 = vpop.f32.mrf.mxu0
  %v1025 = vadd.f32 %v993, %v1024
  %1026 = vdwg.mxu0
  %1027 = vmatpush.msra.mxu0 %v957
  %1028 = vmatpush.msra.mxu0 %v956
  %1029 = vmatpush.msra.mxu0 %v955
  %1030 = vmatpush.msra.mxu0 %v954
  %1031 = vmatpush.msra.mxu0 %v953
  %1032 = vmatpush.msra.mxu0 %v952
  %1033 = vmatpush.msra.mxu0 %v951
  %1034 = vmatpush.msra.mxu0 %v950
  %1035 = vmatpush.msra.mxu0 %v949
  %1036 = vmatpush.msra.mxu0 %v948
  %1037 = vmatpush.msra.mxu0 %v947
  %1038 = vmatpush.msra.mxu0 %v946
  %1039 = vmatpush.msra.mxu0 %v945
  %1040 = vmatpush.msra.mxu0 %v944
  %1041 = vmatpush.msra.mxu0 %v943
  %1042 = vmatpush.msra.mxu0 %v942
  %1043 = vmatmul.f32.gmra.mxu0 %v904
  %v1044 = vpop.f32.mrf.mxu0
  %v1045 = vadd.f32 %v1013, %v1044
  %1046 = vmatmul.f32.gmra.mxu0 %v905
  %v1047 = vpop.f32.mrf.mxu0
  %v1048 = vadd.f32 %v1016, %v1047
  %1049 = vmatmul.f32.gmra.mxu0 %v906
  %v1050 = vpop.f32.mrf.mxu0
  %v1051 = vadd.f32 %v1019, %v1050
  %1052 = vmatmul.f32.gmra.mxu0 %v907
  %v1053 = vpop.f32.mrf.mxu0
  %v1054 = vadd.f32 %v1022, %v1053
  %1055 = vmatmul.f32.gmra.mxu0 %v908
  %v1056 = vpop.f32.mrf.mxu0
  %v1057 = vadd.f32 %v1025, %v1056
  %1058 = vdwg.mxu0
  %v1059 = vadd.f32 %v625, %v1045
  %v1060 = vadd.f32 %v626, %v1048
  %1061 = vst [vmem:[%s6] sm:$0xff] %v1059
  %1062 = vst [vmem:[%s6 + $0x8] sm:$0xff] %v1060
  %v1063 = vadd.f32 %v710, %v1051
  %v1064 = vadd.f32 %v711, %v1054
  %v1065 = vadd.f32 %v712, %v1057
  %s1066 = scalar_lea.vmem %s6, 16
  %1067 = vst [vmem:[%s1066 - $0x2] sm:$0xfc] %v1063
  %1068 = vst [vmem:[%s1066 + $0x6] sm:$0xff] %v1064
  %1069 = vst [vmem:[%s1066 + $0xe] sm:$0x3] %v1065
  // Predicated region
  $region26: #{refine_fused.1} parent=0 // pred_check
    _
  $region27: #{refine_fused.1} parent=0 // pred_check_branch
    %1071 = sbr.rel (0) target = $region29
  $region28: #{refine_fused.1} parent=0 // pred_region
    _
  $region29: #{refine_fused.1} parent=0 // pred_fallthru
    _
  // Predicated region
  $region30: #{refine_fused.1} parent=0 // pred_check
    _
  $region31: #{refine_fused.1} parent=0 // pred_check_branch
    %1073 = sbr.rel (0) target = $region33
  $region32: #{refine_fused.1} parent=0 // pred_region
    _
  $region33: #{refine_fused.1} parent=0 // pred_fallthru
    _

</llo_original>
